<compile_context>
chip_gen: v5e
topology: v5e:2x2
jax: 0.10.0
libtpu: 0.0.40
codegen_flags: <defaults>
</compile_context>

<pallas_src>
import functools

import jax
import jax.numpy as jnp
from jax.experimental import pallas as pl
from jax.experimental.pallas import tpu as pltpu


# ----------------------------------------------------------------------------- kernel
def _mlp_kernel(x_ref, w0_ref, b0_ref, w1_ref, b1_ref, g_ref, beta_ref, s_ref,
                w2_ref, b2_ref, *rest, has_fa):
    if has_fa:
        fa_ref, o_ref = rest
    else:
        (o_ref,) = rest

    wdt = w0_ref.dtype                       # run matmuls in weight storage dtype
    x = x_ref[...].astype(wdt)

    # Linear 0 + SiLU (accumulate f32 on the MXU, activation math in f32)
    h = jnp.dot(x, w0_ref[...], preferred_element_type=jnp.float32)
    h = h + b0_ref[...].astype(jnp.float32)
    h = h * jax.nn.sigmoid(h)

    # Linear 1
    h = jnp.dot(h.astype(wdt), w1_ref[...], preferred_element_type=jnp.float32)
    h = h + b1_ref[...].astype(jnp.float32)

    # Segmented LayerNorm (per original 64-wide row inside the packed 512-lane row).
    # s_ref is a block-diagonal averaging matrix (1/width inside each segment), so
    # both reduces run on the MXU instead of the XLU.  eps matches torch (1e-5).
    mean = jnp.dot(h, s_ref[...], preferred_element_type=jnp.float32)
    c = h - mean
    var = jnp.dot(c * c, s_ref[...], preferred_element_type=jnp.float32)
    h = c * jax.lax.rsqrt(var + 1e-5)
    h = h * g_ref[...].astype(jnp.float32) + beta_ref[...].astype(jnp.float32)

    # SiLU
    h = h * jax.nn.sigmoid(h)

    # Final Linear (+ optional residual first_action); output store is lane-dense.
    y = jnp.dot(h.astype(wdt), w2_ref[...], preferred_element_type=jnp.float32)
    y = y + b2_ref[...].astype(jnp.float32)
    if has_fa:
        y = y + fa_ref[...].astype(jnp.float32)

    o_ref[...] = y.astype(o_ref.dtype)


# ----------------------------------------------------------------------------- helpers
def _round_up(n, m):
    return ((n + m - 1) // m) * m


def choose_packing(batch, input_dim, widths, output_dim, max_packed_width=512):
    """Largest P in {8,4,2,1} such that P | batch and P * max_dim <= max_packed_width."""
    max_dim = max([input_dim, output_dim] + list(widths))
    p = 8
    while p > 1 and (batch % p != 0 or p * max_dim > max_packed_width):
        p //= 2
    return p


def pack_params(params, packing):
    """Block-diagonalize weights / tile biases for `packing` rows per packed row.

    Done once outside the kernel; for packing=1 this is a no-op layout-wise.
    Also builds the f32 block-diagonal averaging matrix used for the segmented
    LayerNorm reduce on the MXU.
    """
    w0, b0, w1, b1, gamma, beta, w2, b2 = params
    p = packing

    def kron(w):
        return jnp.kron(jnp.eye(p, dtype=w.dtype), w)

    def tile(v):
        return jnp.tile(v, (1, p))

    ln_width = w1.shape[1]
    seg = jnp.full((ln_width, ln_width), 1.0 / ln_width, dtype=jnp.float32)
    s = jnp.kron(jnp.eye(p, dtype=jnp.float32), seg)

    return (kron(w0), tile(b0), kron(w1), tile(b1),
            tile(gamma), tile(beta), s, kron(w2), tile(b2))


def _choose_tile_rows(n_rows, row_cap):
    """Packed-row tile: aim for >=2 grid steps (v7x megacore), keep sublane alignment."""
    cand = max(8, _round_up(pl.cdiv(n_rows, 2), 8))
    tile = min(cand, row_cap)
    if tile >= n_rows:
        return n_rows            # one block covering the whole (packed) batch
    return tile                  # multiple of 8; last grid block may be ragged


# ----------------------------------------------------------------------------- wrapper
def mlp_forward(x, packed_params, first_action=None, *, packing=8, tile_b=2048):
    """Fused MLP forward; `packed_params` comes from pack_params(params, packing)."""
    w0p, b0p, w1p, b1p, gp, betap, s, w2p, b2p = packed_params
    B, in_dim = x.shape
    p = packing
    if B % p != 0:
        raise ValueError("batch must be divisible by the packing factor")

    w0_out = w0p.shape[1] // p
    w1_out = w1p.shape[1] // p
    out_dim = w2p.shape[1] // p
    has_fa = first_action is not None

    rows = B // p                                    # packed rows (p batch rows each)
    xp = x.reshape(rows, p * in_dim)                 # free row-major reshape
    fap = first_action.reshape(rows, p * out_dim) if has_fa else None

    row_cap = max(8, (tile_b // p) // 8 * 8)
    tile_r = _choose_tile_rows(rows, row_cap)
    grid = (pl.cdiv(rows, tile_r),)                  # ragged last block handled by Pallas

    batch_spec = lambda d: pl.BlockSpec((tile_r, d), lambda i: (i, 0))
    # Same block index every step => DMA'd once, VMEM-resident across the grid.
    resident = lambda a: pl.BlockSpec(a.shape, lambda i: (0,) * a.ndim)

    in_specs = [batch_spec(p * in_dim),
                resident(w0p), resident(b0p),
                resident(w1p), resident(b1p),
                resident(gp), resident(betap), resident(s),
                resident(w2p), resident(b2p)]
    args = [xp, w0p, b0p, w1p, b1p, gp, betap, s, w2p, b2p]
    if has_fa:
        in_specs.append(batch_spec(p * out_dim))
        args.append(fap)

    flops = 2 * B * (in_dim * w0_out + w0_out * w1_out + w1_out * out_dim)
    flops += 2 * rows * 2 * (p * w1_out) ** 2        # segmented-LN reduces on the MXU
    transcendentals = B * (w0_out + 2 * w1_out)      # two sigmoids + rsqrt
    bytes_accessed = (sum(int(a.size) * a.dtype.itemsize for a in args)
                      + B * out_dim * x.dtype.itemsize)
    cost = pl.CostEstimate(flops=int(flops), transcendentals=int(transcendentals),
                           bytes_accessed=int(bytes_accessed))

    yp = pl.pallas_call(
        functools.partial(_mlp_kernel, has_fa=has_fa),
        out_shape=jax.ShapeDtypeStruct((rows, p * out_dim), x.dtype),
        grid=grid,
        in_specs=in_specs,
        out_specs=batch_spec(p * out_dim),
        compiler_params=pltpu.CompilerParams(dimension_semantics=("parallel",)),
        cost_estimate=cost,
    )(*args)

    return yp.reshape(B, out_dim)                    # free reshape back to (B, out_dim)


# ----------------------------------------------------------------------------- reference / init
def init_params(key, input_dim, widths, output_dim, dtype=jnp.float32):
    """PyTorch-Linear-style init (uniform +-1/sqrt(fan_in)); LN gamma=1, beta=0."""
    dims = [input_dim] + list(widths) + [output_dim]
    keys = jax.random.split(key, 2 * (len(dims) - 1))
    params = []
    for i in range(len(dims) - 1):
        fan_in, fan_out = dims[i], dims[i + 1]
        bound = 1.0 / (fan_in ** 0.5)
        w = jax.random.uniform(keys[2 * i], (fan_in, fan_out), dtype,
                               minval=-bound, maxval=bound)
        b = jax.random.uniform(keys[2 * i + 1], (1, fan_out), dtype,
                               minval=-bound, maxval=bound)
        params.append((w, b))
    (w0, b0), (w1, b1), (w2, b2) = params
    gamma = jnp.ones((1, widths[1]), dtype)
    beta = jnp.zeros((1, widths[1]), dtype)
    return (w0, b0, w1, b1, gamma, beta, w2, b2)


def mlp_reference(x, params, first_action=None):
    """Pure-JAX reference (unpacked weights) for correctness checking."""
    (w0, b0, w1, b1, gamma, beta, w2, b2) = params
    h = x @ w0 + b0
    h = h * jax.nn.sigmoid(h)
    h = h @ w1 + b1
    mean = jnp.mean(h, axis=-1, keepdims=True)
    var = jnp.mean((h - mean) ** 2, axis=-1, keepdims=True)
    h = (h - mean) * jax.lax.rsqrt(var + 1e-5) * gamma + beta
    h = h * jax.nn.sigmoid(h)
    y = h @ w2 + b2
    if first_action is not None:
        y = y + first_action
    return y


# ----------------------------------------------------------------------------- main
if __name__ == "__main__":
    key = jax.random.PRNGKey(0)
    k_x, k_p, k_fa, k_x2, k_x3 = jax.random.split(key, 5)

    input_dim, widths, output_dim = 16, [64, 64], 16
    params = init_params(k_p, input_dim, widths, output_dim)

    def run_and_check(x, fa, prm, name, atol, rtol, tile_b=2048):
        B = x.shape[0]
        p = choose_packing(B, input_dim, widths, output_dim)
        packed = pack_params(prm, p)
        y = jax.block_until_ready(mlp_forward(x, packed, fa, packing=p, tile_b=tile_b))
        prm_f32 = jax.tree_util.tree_map(lambda a: a.astype(jnp.float32), prm)
        y_ref = mlp_reference(x.astype(jnp.float32), prm_f32,
                              None if fa is None else fa.astype(jnp.float32))
        assert y.shape == (B, output_dim) and y.dtype == x.dtype, name
        assert jnp.allclose(y.astype(jnp.float32), y_ref, atol=atol, rtol=rtol), \
            f"mismatch vs reference: {name}"

    # 1) B=8, packing=8, single grid step, with residual first_action
    x = jax.random.normal(k_x, (8, input_dim), jnp.float32)
    fa = jax.random.normal(k_fa, (8, output_dim), jnp.float32)
    run_and_check(x, fa, params, "fa", 1e-4, 1e-4)

    # 2) same, without first_action (no zero tensor materialized / DMA'd)
    run_and_check(x, None, params, "no_fa", 1e-4, 1e-4)

    # 3) B=200: packing=8, >=2 grid steps (both v7x TCs), ragged last block masked on
    #    writeback, resident weights reused across steps, zero wrapper pad/slice
    x2 = jax.random.normal(k_x2, (200, input_dim), jnp.float32)
    run_and_check(x2, None, params, "grid_ragged", 1e-4, 1e-4)

    # 3b) same batch, forced small tiles -> 4-step grid
    run_and_check(x2, None, params, "grid_multistep", 1e-4, 1e-4, tile_b=64)

    # 4) B=20: batch not a multiple of 8 -> packing factor drops to 4; still no padding
    x3 = jax.random.normal(k_x3, (20, input_dim), jnp.float32)
    run_and_check(x3, None, params, "pack4", 1e-4, 1e-4)

    # 5) bf16 activations + weights (halved HBM traffic, native bf16 MXU); LN / SiLU
    #    math stays f32 inside the kernel.
    params_bf16 = jax.tree_util.tree_map(lambda a: a.astype(jnp.bfloat16), params)
    run_and_check(x2.astype(jnp.bfloat16), None, params_bf16, "bf16", 5e-2, 5e-2)

    print("KERNEL_OK")
</pallas_src>

<mosaic_0001>
module attributes {stable_mosaic.version = 11 : i64} {
  func.func @_mlp_kernel(%arg0: i32, %arg1: memref<1x128xf32, #tpu.memory_space<vmem>>, %arg2: memref<128x512xf32, #tpu.memory_space<vmem>>, %arg3: memref<1x512xf32, #tpu.memory_space<vmem>>, %arg4: memref<512x512xf32, #tpu.memory_space<vmem>>, %arg5: memref<1x512xf32, #tpu.memory_space<vmem>>, %arg6: memref<1x512xf32, #tpu.memory_space<vmem>>, %arg7: memref<1x512xf32, #tpu.memory_space<vmem>>, %arg8: memref<512x512xf32, #tpu.memory_space<vmem>>, %arg9: memref<512x128xf32, #tpu.memory_space<vmem>>, %arg10: memref<1x128xf32, #tpu.memory_space<vmem>>, %arg11: memref<1x128xf32, #tpu.memory_space<vmem>>, %arg12: memref<1x128xf32, #tpu.memory_space<vmem>>) attributes {dimension_semantics = [#tpu.dimension_semantics<parallel>], iteration_bounds = array<i64: 1>, scalar_prefetch = 0 : i64, scratch_operands = 0 : i64, tpu.core_type = #tpu.core_type<tc>, window_params = [{transform_indices = @transform_0, window_bounds = array<i64: 1, 128>}, {pipeline_mode = #tpu.pipeline_mode<synchronous>, transform_indices = @transform_1, window_bounds = array<i64: 128, 512>}, {pipeline_mode = #tpu.pipeline_mode<synchronous>, transform_indices = @transform_2, window_bounds = array<i64: 1, 512>}, {pipeline_mode = #tpu.pipeline_mode<synchronous>, transform_indices = @transform_3, window_bounds = array<i64: 512, 512>}, {pipeline_mode = #tpu.pipeline_mode<synchronous>, transform_indices = @transform_4, window_bounds = array<i64: 1, 512>}, {pipeline_mode = #tpu.pipeline_mode<synchronous>, transform_indices = @transform_5, window_bounds = array<i64: 1, 512>}, {pipeline_mode = #tpu.pipeline_mode<synchronous>, transform_indices = @transform_6, window_bounds = array<i64: 1, 512>}, {pipeline_mode = #tpu.pipeline_mode<synchronous>, transform_indices = @transform_7, window_bounds = array<i64: 512, 512>}, {pipeline_mode = #tpu.pipeline_mode<synchronous>, transform_indices = @transform_8, window_bounds = array<i64: 512, 128>}, {pipeline_mode = #tpu.pipeline_mode<synchronous>, transform_indices = @transform_9, window_bounds = array<i64: 1, 128>}, {transform_indices = @transform_10, window_bounds = array<i64: 1, 128>}, {transform_indices = @transform_11, window_bounds = array<i64: 1, 128>}]} {
    %c0 = arith.constant 0 : index
    %c0_0 = arith.constant 0 : index
    %0 = vector.load %arg1[%c0, %c0_0] : memref<1x128xf32, #tpu.memory_space<vmem>>, vector<1x128xf32>
    %c0_1 = arith.constant 0 : index
    %c0_2 = arith.constant 0 : index
    %1 = vector.load %arg2[%c0_1, %c0_2] : memref<128x512xf32, #tpu.memory_space<vmem>>, vector<128x512xf32>
    %cst = arith.constant dense<0.000000e+00> : vector<1x512xf32>
    %2 = tpu.matmul %0, %1, %cst {dimension_numbers = #tpu.dot_dimension_numbers<[1], [0], [0], [1], [0, 0, 1, 1], [], []>} : vector<1x128xf32>, vector<128x512xf32>, vector<1x512xf32> -> vector<1x512xf32>
    %c0_3 = arith.constant 0 : index
    %c0_4 = arith.constant 0 : index
    %3 = vector.load %arg3[%c0_3, %c0_4] : memref<1x512xf32, #tpu.memory_space<vmem>>, vector<1x512xf32>
    %4 = arith.addf %2, %3 : vector<1x512xf32>
    %5 = arith.negf %4 : vector<1x512xf32>
    %6 = math.exp %5 : vector<1x512xf32>
    %cst_5 = arith.constant 1.000000e+00 : f32
    %7 = vector.broadcast %cst_5 : f32 to vector<1x512xf32>
    %8 = arith.addf %7, %6 : vector<1x512xf32>
    %9 = arith.divf %7, %8 : vector<1x512xf32>
    %10 = arith.mulf %4, %9 : vector<1x512xf32>
    %c0_6 = arith.constant 0 : index
    %c0_7 = arith.constant 0 : index
    %11 = vector.load %arg4[%c0_6, %c0_7] : memref<512x512xf32, #tpu.memory_space<vmem>>, vector<512x512xf32>
    %cst_8 = arith.constant dense<0.000000e+00> : vector<1x512xf32>
    %12 = tpu.matmul %10, %11, %cst_8 {dimension_numbers = #tpu.dot_dimension_numbers<[1], [0], [0], [1], [0, 0, 1, 1], [], []>} : vector<1x512xf32>, vector<512x512xf32>, vector<1x512xf32> -> vector<1x512xf32>
    %c0_9 = arith.constant 0 : index
    %c0_10 = arith.constant 0 : index
    %13 = vector.load %arg5[%c0_9, %c0_10] : memref<1x512xf32, #tpu.memory_space<vmem>>, vector<1x512xf32>
    %14 = arith.addf %12, %13 : vector<1x512xf32>
    %c0_11 = arith.constant 0 : index
    %c0_12 = arith.constant 0 : index
    %15 = vector.load %arg8[%c0_11, %c0_12] : memref<512x512xf32, #tpu.memory_space<vmem>>, vector<512x512xf32>
    %cst_13 = arith.constant dense<0.000000e+00> : vector<1x512xf32>
    %16 = tpu.matmul %14, %15, %cst_13 {dimension_numbers = #tpu.dot_dimension_numbers<[1], [0], [0], [1], [0, 0, 1, 1], [], []>} : vector<1x512xf32>, vector<512x512xf32>, vector<1x512xf32> -> vector<1x512xf32>
    %17 = arith.subf %14, %16 : vector<1x512xf32>
    %18 = arith.mulf %17, %17 : vector<1x512xf32>
    %c0_14 = arith.constant 0 : index
    %c0_15 = arith.constant 0 : index
    %19 = vector.load %arg8[%c0_14, %c0_15] : memref<512x512xf32, #tpu.memory_space<vmem>>, vector<512x512xf32>
    %cst_16 = arith.constant dense<0.000000e+00> : vector<1x512xf32>
    %20 = tpu.matmul %18, %19, %cst_16 {dimension_numbers = #tpu.dot_dimension_numbers<[1], [0], [0], [1], [0, 0, 1, 1], [], []>} : vector<1x512xf32>, vector<512x512xf32>, vector<1x512xf32> -> vector<1x512xf32>
    %cst_17 = arith.constant 9.99999974E-6 : f32
    %21 = vector.broadcast %cst_17 : f32 to vector<1x512xf32>
    %22 = arith.addf %20, %21 : vector<1x512xf32>
    %23 = math.rsqrt %22 : vector<1x512xf32>
    %24 = arith.mulf %17, %23 : vector<1x512xf32>
    %c0_18 = arith.constant 0 : index
    %c0_19 = arith.constant 0 : index
    %25 = vector.load %arg6[%c0_18, %c0_19] : memref<1x512xf32, #tpu.memory_space<vmem>>, vector<1x512xf32>
    %26 = arith.mulf %24, %25 : vector<1x512xf32>
    %c0_20 = arith.constant 0 : index
    %c0_21 = arith.constant 0 : index
    %27 = vector.load %arg7[%c0_20, %c0_21] : memref<1x512xf32, #tpu.memory_space<vmem>>, vector<1x512xf32>
    %28 = arith.addf %26, %27 : vector<1x512xf32>
    %29 = arith.negf %28 : vector<1x512xf32>
    %30 = math.exp %29 : vector<1x512xf32>
    %cst_22 = arith.constant 1.000000e+00 : f32
    %31 = vector.broadcast %cst_22 : f32 to vector<1x512xf32>
    %32 = arith.addf %31, %30 : vector<1x512xf32>
    %33 = arith.divf %31, %32 : vector<1x512xf32>
    %34 = arith.mulf %28, %33 : vector<1x512xf32>
    %c0_23 = arith.constant 0 : index
    %c0_24 = arith.constant 0 : index
    %35 = vector.load %arg9[%c0_23, %c0_24] : memref<512x128xf32, #tpu.memory_space<vmem>>, vector<512x128xf32>
    %cst_25 = arith.constant dense<0.000000e+00> : vector<1x128xf32>
    %36 = tpu.matmul %34, %35, %cst_25 {dimension_numbers = #tpu.dot_dimension_numbers<[1], [0], [0], [1], [0, 0, 1, 1], [], []>} : vector<1x512xf32>, vector<512x128xf32>, vector<1x128xf32> -> vector<1x128xf32>
    %c0_26 = arith.constant 0 : index
    %c0_27 = arith.constant 0 : index
    %37 = vector.load %arg10[%c0_26, %c0_27] : memref<1x128xf32, #tpu.memory_space<vmem>>, vector<1x128xf32>
    %38 = arith.addf %36, %37 : vector<1x128xf32>
    %c0_28 = arith.constant 0 : index
    %c0_29 = arith.constant 0 : index
    %39 = vector.load %arg11[%c0_28, %c0_29] : memref<1x128xf32, #tpu.memory_space<vmem>>, vector<1x128xf32>
    %40 = arith.addf %38, %39 : vector<1x128xf32>
    %c0_30 = arith.constant 0 : index
    %c0_31 = arith.constant 0 : index
    %41 = vector.load %arg12[%c0_30, %c0_31] : memref<1x128xf32, #tpu.memory_space<vmem>>, vector<1x128xf32>
    tpu.vector_store %arg12[%c0_30, %c0_31], %40 {strides = array<i32>} : memref<1x128xf32, #tpu.memory_space<vmem>>, vector<1x128xf32>,
    return
  }
  func.func @transform_0(%arg0: i32) -> (i32, i32) {
    %c0_i32 = arith.constant 0 : i32
    %c0_i32_0 = arith.constant 0 : i32
    return %arg0, %c0_i32 : i32, i32
  }
  func.func @transform_1(%arg0: i32) -> (i32, i32) {
    %c0_i32 = arith.constant 0 : i32
    %c0_i32_0 = arith.constant 0 : i32
    %c0_i32_1 = arith.constant 0 : i32
    return %c0_i32, %c0_i32_0 : i32, i32
  }
  func.func @transform_2(%arg0: i32) -> (i32, i32) {
    %c0_i32 = arith.constant 0 : i32
    %c0_i32_0 = arith.constant 0 : i32
    %c0_i32_1 = arith.constant 0 : i32
    return %c0_i32, %c0_i32_0 : i32, i32
  }
  func.func @transform_3(%arg0: i32) -> (i32, i32) {
    %c0_i32 = arith.constant 0 : i32
    %c0_i32_0 = arith.constant 0 : i32
    %c0_i32_1 = arith.constant 0 : i32
    return %c0_i32, %c0_i32_0 : i32, i32
  }
  func.func @transform_4(%arg0: i32) -> (i32, i32) {
    %c0_i32 = arith.constant 0 : i32
    %c0_i32_0 = arith.constant 0 : i32
    %c0_i32_1 = arith.constant 0 : i32
    return %c0_i32, %c0_i32_0 : i32, i32
  }
  func.func @transform_5(%arg0: i32) -> (i32, i32) {
    %c0_i32 = arith.constant 0 : i32
    %c0_i32_0 = arith.constant 0 : i32
    %c0_i32_1 = arith.constant 0 : i32
    return %c0_i32, %c0_i32_0 : i32, i32
  }
  func.func @transform_6(%arg0: i32) -> (i32, i32) {
    %c0_i32 = arith.constant 0 : i32
    %c0_i32_0 = arith.constant 0 : i32
    %c0_i32_1 = arith.constant 0 : i32
    return %c0_i32, %c0_i32_0 : i32, i32
  }
  func.func @transform_7(%arg0: i32) -> (i32, i32) {
    %c0_i32 = arith.constant 0 : i32
    %c0_i32_0 = arith.constant 0 : i32
    %c0_i32_1 = arith.constant 0 : i32
    return %c0_i32, %c0_i32_0 : i32, i32
  }
  func.func @transform_8(%arg0: i32) -> (i32, i32) {
    %c0_i32 = arith.constant 0 : i32
    %c0_i32_0 = arith.constant 0 : i32
    %c0_i32_1 = arith.constant 0 : i32
    return %c0_i32, %c0_i32_0 : i32, i32
  }
  func.func @transform_9(%arg0: i32) -> (i32, i32) {
    %c0_i32 = arith.constant 0 : i32
    %c0_i32_0 = arith.constant 0 : i32
    %c0_i32_1 = arith.constant 0 : i32
    return %c0_i32, %c0_i32_0 : i32, i32
  }
  func.func @transform_10(%arg0: i32) -> (i32, i32) {
    %c0_i32 = arith.constant 0 : i32
    %c0_i32_0 = arith.constant 0 : i32
    return %arg0, %c0_i32 : i32, i32
  }
  func.func @transform_11(%arg0: i32) -> (i32, i32) {
    %c0_i32 = arith.constant 0 : i32
    %c0_i32_0 = arith.constant 0 : i32
    return %arg0, %c0_i32 : i32, i32
  }
}

</mosaic_0001>

<llo_original>
// kernel: tpu_custom_call.1
$region0: #{tpu_custom_call.1}
  #allocation0 [shape = 'u32[]', space=smem, size = 0x4, offset = 0x4, fixed_abs, tag = 'smem constant byte address 0x4 - core index']
  #allocation1 [shape = 'u32[72,128]{1,0:T(1,128)}', space=vmem, size = 0x9000, scoped, tag = 'internal scratch']
  %s0 = inlined_call_operand.hbm [shape: f32[1,128], index: 0, kind: input, shape index: {}]
  %s1 = inlined_call_operand.hbm [shape: f32[128,512], index: 1, kind: input, shape index: {}]
  %s2 = inlined_call_operand.hbm [shape: f32[1,512], index: 2, kind: input, shape index: {}]
  %s3 = inlined_call_operand.hbm [shape: f32[512,512], index: 3, kind: input, shape index: {}]
  %s4 = inlined_call_operand.hbm [shape: f32[1,512], index: 4, kind: input, shape index: {}]
  %s5 = inlined_call_operand.vmem [shape: f32[1,512], index: 5, kind: input, shape index: {}]
  %s6 = inlined_call_operand.hbm [shape: f32[1,512], index: 6, kind: input, shape index: {}]
  %s7 = inlined_call_operand.hbm [shape: f32[512,512], index: 7, kind: input, shape index: {}]
  %s8 = inlined_call_operand.hbm [shape: f32[512,128], index: 8, kind: input, shape index: {}]
  %s9 = inlined_call_operand.vmem [shape: f32[1,128], index: 9, kind: input, shape index: {}]
  %s10 = inlined_call_operand.vmem [shape: f32[1,128], index: 10, kind: input, shape index: {}]
  %s11 = inlined_call_operand.hbm [shape: f32[1,128], index: 11, kind: output, shape index: {}]
  %s12 = sld [smem:[#allocation0]]
  $region86: #{tpu_custom_call.1} parent=0
    _
  %s14 = ssub.s32 1, %s12
  %s15 = scalar_select 0, %s14, %s12
  $region1: #{tpu_custom_call.1} parent=0
    #allocation2 [shape = 'u8[512]{0}', space=vmem, size = 0x400, scoped, tag = 'input window, operand 0, single buffered']
    #allocation3 [shape = 's32[1]{0}', space=sflag, size = 0x4, scoped, tag = 'scoped memory for tpu_custom_call.1']
    #allocation4 [shape = 's32[1]{0}', space=sflag, size = 0x4, scoped, tag = 'scoped memory for tpu_custom_call.1']
    #allocation5 [shape = 'u8[262144]{0}', space=vmem, size = 0x40000, scoped, tag = 'input window, operand 1, single buffered']
    #allocation6 [shape = 's32[1]{0}', space=sflag, size = 0x4, scoped, tag = 'scoped memory for tpu_custom_call.1']
    #allocation7 [shape = 'u8[2048]{0}', space=vmem, size = 0x800, scoped, tag = 'input window, operand 2, single buffered']
    #allocation8 [shape = 'u8[1048576]{0}', space=vmem, size = 0x100000, scoped, tag = 'input window, operand 3, single buffered']
    #allocation9 [shape = 's32[1]{0}', space=sflag, size = 0x4, scoped, tag = 'scoped memory for tpu_custom_call.1']
    #allocation10 [shape = 'u8[2048]{0}', space=vmem, size = 0x800, scoped, tag = 'input window, operand 4, single buffered']
    #allocation11 [shape = 'u8[2048]{0}', space=vmem, size = 0x800, scoped, tag = 'input window, operand 6, single buffered']
    #allocation12 [shape = 's32[1]{0}', space=sflag, size = 0x4, scoped, tag = 'scoped memory for tpu_custom_call.1']
    #allocation13 [shape = 'u8[1048576]{0}', space=vmem, size = 0x100000, scoped, tag = 'input window, operand 7, single buffered']
    #allocation14 [shape = 'u8[262144]{0}', space=vmem, size = 0x40000, scoped, tag = 'input window, operand 8, single buffered']
    #allocation15 [shape = 's32[1]{0}', space=sflag, size = 0x4, scoped, tag = 'scoped memory for tpu_custom_call.1']
    #allocation16 [shape = 'u8[512]{0}', space=vmem, size = 0x400, scoped, tag = 'output window, operand 0, single buffered']
    %16 = vsyncpa [#allocation3], 0
    %17 = vsyncpa [#allocation6], 0
    %18 = vsyncpa [#allocation9], 0
    %19 = vsyncpa [#allocation12], 0
    %20 = vsyncpa [#allocation15], 0
    %21 = vsyncpa [#allocation4], 0
    // Predicated region
    $region2: #{tpu_custom_call.1} parent=1 // pred_check
      _
    $region3: #{tpu_custom_call.1} parent=1 // pred_check_branch
      %23 = sbr.rel (0) target = $region5
    $region4: #{tpu_custom_call.1} parent=1 // pred_region
      %25 = vsyncadd [#allocation3], 0
      %s27 = sshll.u32 %s0, 4
      %s28 = int_to_ptr.hbm [resolvable:$true] %s27
      %s29 = sshll.u32 [#allocation2], 4
      %s30 = int_to_ptr.vmem [resolvable:$true] %s29
      %32 = dma.hbm_to_vmem [thread:$0]  %s28, 16, %s30, [#allocation3]
    $region5: #{tpu_custom_call.1} parent=1 // pred_fallthru
      _
    // Predicated region
    $region6: #{tpu_custom_call.1} parent=1 // pred_check
      _
    $region7: #{tpu_custom_call.1} parent=1 // pred_check_branch
      %34 = sbr.rel (0) target = $region9
    $region8: #{tpu_custom_call.1} parent=1 // pred_region
      %36 = vsyncadd [#allocation6], 0
      %s37 = sshll.u32 %s1, 4
      %s38 = int_to_ptr.hbm [resolvable:$true] %s37
      %s39 = sshll.u32 [#allocation5], 4
      %s40 = int_to_ptr.vmem [resolvable:$true] %s39
      %45 = dma.hbm_to_vmem [thread:$0]  %s38, 8192, %s40, [#allocation6], 512, 512, 32
    $region9: #{tpu_custom_call.1} parent=1 // pred_fallthru
      _
    // Predicated region
    $region10: #{tpu_custom_call.1} parent=1 // pred_check
      _
    $region11: #{tpu_custom_call.1} parent=1 // pred_check_branch
      %47 = sbr.rel (0) target = $region13
    $region12: #{tpu_custom_call.1} parent=1 // pred_region
      %49 = vsyncadd [#allocation6], 0
      %s51 = sshll.u32 %s2, 4
      %s52 = int_to_ptr.hbm [resolvable:$true] %s51
      %s53 = sshll.u32 [#allocation7], 4
      %s54 = int_to_ptr.vmem [resolvable:$true] %s53
      %56 = dma.hbm_to_vmem [thread:$0]  %s52, 64, %s54, [#allocation6]
    $region13: #{tpu_custom_call.1} parent=1 // pred_fallthru
      _
    // Predicated region
    $region14: #{tpu_custom_call.1} parent=1 // pred_check
      _
    $region15: #{tpu_custom_call.1} parent=1 // pred_check_branch
      %58 = sbr.rel (0) target = $region17
    $region16: #{tpu_custom_call.1} parent=1 // pred_region
      %60 = vsyncadd [#allocation9], 0
      %s61 = sshll.u32 %s3, 4
      %s62 = int_to_ptr.hbm [resolvable:$true] %s61
      %s63 = sshll.u32 [#allocation8], 4
      %s64 = int_to_ptr.vmem [resolvable:$true] %s63
      %69 = dma.hbm_to_vmem [thread:$0]  %s62, 32768, %s64, [#allocation9], 512, 512, 32
    $region17: #{tpu_custom_call.1} parent=1 // pred_fallthru
      _
    // Predicated region
    $region18: #{tpu_custom_call.1} parent=1 // pred_check
      _
    $region19: #{tpu_custom_call.1} parent=1 // pred_check_branch
      %71 = sbr.rel (0) target = $region21
    $region20: #{tpu_custom_call.1} parent=1 // pred_region
      %73 = vsyncadd [#allocation9], 0
      %s75 = sshll.u32 %s4, 4
      %s76 = int_to_ptr.hbm [resolvable:$true] %s75
      %s77 = sshll.u32 [#allocation10], 4
      %s78 = int_to_ptr.vmem [resolvable:$true] %s77
      %80 = dma.hbm_to_vmem [thread:$0]  %s76, 64, %s78, [#allocation9]
    $region21: #{tpu_custom_call.1} parent=1 // pred_fallthru
      _
    // Predicated region
    $region22: #{tpu_custom_call.1} parent=1 // pred_check
      _
    $region23: #{tpu_custom_call.1} parent=1 // pred_check_branch
      %82 = sbr.rel (0) target = $region25
    $region24: #{tpu_custom_call.1} parent=1 // pred_region
      _
    $region25: #{tpu_custom_call.1} parent=1 // pred_fallthru
      _
    // Predicated region
    $region26: #{tpu_custom_call.1} parent=1 // pred_check
      _
    $region27: #{tpu_custom_call.1} parent=1 // pred_check_branch
      %84 = sbr.rel (0) target = $region29
    $region28: #{tpu_custom_call.1} parent=1 // pred_region
      %86 = vsyncadd [#allocation12], 0
      %s88 = sshll.u32 %s6, 4
      %s89 = int_to_ptr.hbm [resolvable:$true] %s88
      %s90 = sshll.u32 [#allocation11], 4
      %s91 = int_to_ptr.vmem [resolvable:$true] %s90
      %93 = dma.hbm_to_vmem [thread:$0]  %s89, 64, %s91, [#allocation12]
    $region29: #{tpu_custom_call.1} parent=1 // pred_fallthru
      _
    // Predicated region
    $region30: #{tpu_custom_call.1} parent=1 // pred_check
      _
    $region31: #{tpu_custom_call.1} parent=1 // pred_check_branch
      %95 = sbr.rel (0) target = $region33
    $region32: #{tpu_custom_call.1} parent=1 // pred_region
      %97 = vsyncadd [#allocation12], 0
      %s98 = sshll.u32 %s7, 4
      %s99 = int_to_ptr.hbm [resolvable:$true] %s98
      %s100 = sshll.u32 [#allocation13], 4
      %s101 = int_to_ptr.vmem [resolvable:$true] %s100
      %106 = dma.hbm_to_vmem [thread:$0]  %s99, 32768, %s101, [#allocation12], 512, 512, 32
    $region33: #{tpu_custom_call.1} parent=1 // pred_fallthru
      _
    // Predicated region
    $region34: #{tpu_custom_call.1} parent=1 // pred_check
      _
    $region35: #{tpu_custom_call.1} parent=1 // pred_check_branch
      %108 = sbr.rel (0) target = $region37
    $region36: #{tpu_custom_call.1} parent=1 // pred_region
      %110 = vsyncadd [#allocation15], 0
      %s111 = sshll.u32 %s8, 4
      %s112 = int_to_ptr.hbm [resolvable:$true] %s111
      %s113 = sshll.u32 [#allocation14], 4
      %s114 = int_to_ptr.vmem [resolvable:$true] %s113
      %119 = dma.hbm_to_vmem [thread:$0]  %s112, 8192, %s114, [#allocation15], 128, 128, 8
    $region37: #{tpu_custom_call.1} parent=1 // pred_fallthru
      _
    // Predicated region
    $region38: #{tpu_custom_call.1} parent=1 // pred_check
      _
    $region39: #{tpu_custom_call.1} parent=1 // pred_check_branch
      %121 = sbr.rel (0) target = $region41
    $region40: #{tpu_custom_call.1} parent=1 // pred_region
      _
    $region41: #{tpu_custom_call.1} parent=1 // pred_fallthru
      _
    // Predicated region
    $region42: #{tpu_custom_call.1} parent=1 // pred_check
      _
    $region43: #{tpu_custom_call.1} parent=1 // pred_check_branch
      %123 = sbr.rel (0) target = $region45
    $region44: #{tpu_custom_call.1} parent=1 // pred_region
      _
    $region45: #{tpu_custom_call.1} parent=1 // pred_fallthru
      _
    // Predicated region
    $region46: #{tpu_custom_call.1} parent=1 // pred_check
      _
    $region47: #{tpu_custom_call.1} parent=1 // pred_check_branch
      %125 = sbr.rel (0) target = $region49
    $region48: #{tpu_custom_call.1} parent=1 // pred_region
      %127 = dma.done [#allocation3], 16
    $region49: #{tpu_custom_call.1} parent=1 // pred_fallthru
      _
    // Predicated region
    $region50: #{tpu_custom_call.1} parent=1 // pred_check
      _
    $region51: #{tpu_custom_call.1} parent=1 // pred_check_branch
      %129 = sbr.rel (0) target = $region53
    $region52: #{tpu_custom_call.1} parent=1 // pred_region
      %131 = dma.done [#allocation6], 8192
    $region53: #{tpu_custom_call.1} parent=1 // pred_fallthru
      _
    // Predicated region
    $region54: #{tpu_custom_call.1} parent=1 // pred_check
      _
    $region55: #{tpu_custom_call.1} parent=1 // pred_check_branch
      %133 = sbr.rel (0) target = $region57
    $region56: #{tpu_custom_call.1} parent=1 // pred_region
      %135 = dma.done [#allocation6], 64
    $region57: #{tpu_custom_call.1} parent=1 // pred_fallthru
      _
    // Predicated region
    $region58: #{tpu_custom_call.1} parent=1 // pred_check
      _
    $region59: #{tpu_custom_call.1} parent=1 // pred_check_branch
      %137 = sbr.rel (0) target = $region61
    $region60: #{tpu_custom_call.1} parent=1 // pred_region
      %139 = dma.done [#allocation9], 32768
    $region61: #{tpu_custom_call.1} parent=1 // pred_fallthru
      _
    // Predicated region
    $region62: #{tpu_custom_call.1} parent=1 // pred_check
      _
    $region63: #{tpu_custom_call.1} parent=1 // pred_check_branch
      %141 = sbr.rel (0) target = $region65
    $region64: #{tpu_custom_call.1} parent=1 // pred_region
      %143 = dma.done [#allocation9], 64
    $region65: #{tpu_custom_call.1} parent=1 // pred_fallthru
      _
    // Predicated region
    $region66: #{tpu_custom_call.1} parent=1 // pred_check
      _
    $region67: #{tpu_custom_call.1} parent=1 // pred_check_branch
      %145 = sbr.rel (0) target = $region69
    $region68: #{tpu_custom_call.1} parent=1 // pred_region
      %147 = dma.done [#allocation12], 64
    $region69: #{tpu_custom_call.1} parent=1 // pred_fallthru
      _
    // Predicated region
    $region70: #{tpu_custom_call.1} parent=1 // pred_check
      _
    $region71: #{tpu_custom_call.1} parent=1 // pred_check_branch
      %149 = sbr.rel (0) target = $region73
    $region72: #{tpu_custom_call.1} parent=1 // pred_region
      %151 = dma.done [#allocation12], 32768
    $region73: #{tpu_custom_call.1} parent=1 // pred_fallthru
      _
    // Predicated region
    $region74: #{tpu_custom_call.1} parent=1 // pred_check
      _
    $region75: #{tpu_custom_call.1} parent=1 // pred_check_branch
      %153 = sbr.rel (0) target = $region77
    $region76: #{tpu_custom_call.1} parent=1 // pred_region
      %155 = dma.done [#allocation15], 8192
    $region77: #{tpu_custom_call.1} parent=1 // pred_fallthru
      _
    %v156 = vld [vmem:[#allocation2] sm:$0x1]
    %v157 = vld [vmem:[#allocation5] sm:$0xff]
    %v158 = vld [vmem:[#allocation5 + $0x8] sm:$0xff]
    %v159 = vld [vmem:[#allocation5 + $0x10] sm:$0xff]
    %v160 = vld [vmem:[#allocation5 + $0x18] sm:$0xff]
    %v161 = vld [vmem:[#allocation5 + $0x20] sm:$0xff]
    %v162 = vld [vmem:[#allocation5 + $0x28] sm:$0xff]
    %v163 = vld [vmem:[#allocation5 + $0x30] sm:$0xff]
    %v164 = vld [vmem:[#allocation5 + $0x38] sm:$0xff]
    %v165 = vld [vmem:[#allocation5 + $0x40] sm:$0xff]
    %v166 = vld [vmem:[#allocation5 + $0x48] sm:$0xff]
    %v167 = vld [vmem:[#allocation5 + $0x50] sm:$0xff]
    %v168 = vld [vmem:[#allocation5 + $0x58] sm:$0xff]
    %v169 = vld [vmem:[#allocation5 + $0x60] sm:$0xff]
    %v170 = vld [vmem:[#allocation5 + $0x68] sm:$0xff]
    %v171 = vld [vmem:[#allocation5 + $0x70] sm:$0xff]
    %v172 = vld [vmem:[#allocation5 + $0x78] sm:$0xff]
    %v173 = vld [vmem:[#allocation5 + $0x80] sm:$0xff]
    %v174 = vld [vmem:[#allocation5 + $0x88] sm:$0xff]
    %v175 = vld [vmem:[#allocation5 + $0x90] sm:$0xff]
    %v176 = vld [vmem:[#allocation5 + $0x98] sm:$0xff]
    %v177 = vld [vmem:[#allocation5 + $0xa0] sm:$0xff]
    %v178 = vld [vmem:[#allocation5 + $0xa8] sm:$0xff]
    %v179 = vld [vmem:[#allocation5 + $0xb0] sm:$0xff]
    %v180 = vld [vmem:[#allocation5 + $0xb8] sm:$0xff]
    %v181 = vld [vmem:[#allocation5 + $0xc0] sm:$0xff]
    %v182 = vld [vmem:[#allocation5 + $0xc8] sm:$0xff]
    %v183 = vld [vmem:[#allocation5 + $0xd0] sm:$0xff]
    %v184 = vld [vmem:[#allocation5 + $0xd8] sm:$0xff]
    %v185 = vld [vmem:[#allocation5 + $0xe0] sm:$0xff]
    %v186 = vld [vmem:[#allocation5 + $0xe8] sm:$0xff]
    %v187 = vld [vmem:[#allocation5 + $0xf0] sm:$0xff]
    %v188 = vld [vmem:[#allocation5 + $0xf8] sm:$0xff]
    %v189 = vld [vmem:[#allocation5 + $0x100] sm:$0xff]
    %v190 = vld [vmem:[#allocation5 + $0x108] sm:$0xff]
    %v191 = vld [vmem:[#allocation5 + $0x110] sm:$0xff]
    %v192 = vld [vmem:[#allocation5 + $0x118] sm:$0xff]
    %v193 = vld [vmem:[#allocation5 + $0x120] sm:$0xff]
    %v194 = vld [vmem:[#allocation5 + $0x128] sm:$0xff]
    %v195 = vld [vmem:[#allocation5 + $0x130] sm:$0xff]
    %v196 = vld [vmem:[#allocation5 + $0x138] sm:$0xff]
    %v197 = vld [vmem:[#allocation5 + $0x140] sm:$0xff]
    %v198 = vld [vmem:[#allocation5 + $0x148] sm:$0xff]
    %v199 = vld [vmem:[#allocation5 + $0x150] sm:$0xff]
    %v200 = vld [vmem:[#allocation5 + $0x158] sm:$0xff]
    %v201 = vld [vmem:[#allocation5 + $0x160] sm:$0xff]
    %v202 = vld [vmem:[#allocation5 + $0x168] sm:$0xff]
    %v203 = vld [vmem:[#allocation5 + $0x170] sm:$0xff]
    %v204 = vld [vmem:[#allocation5 + $0x178] sm:$0xff]
    %v205 = vld [vmem:[#allocation5 + $0x180] sm:$0xff]
    %v206 = vld [vmem:[#allocation5 + $0x188] sm:$0xff]
    %v207 = vld [vmem:[#allocation5 + $0x190] sm:$0xff]
    %v208 = vld [vmem:[#allocation5 + $0x198] sm:$0xff]
    %v209 = vld [vmem:[#allocation5 + $0x1a0] sm:$0xff]
    %v210 = vld [vmem:[#allocation5 + $0x1a8] sm:$0xff]
    %v211 = vld [vmem:[#allocation5 + $0x1b0] sm:$0xff]
    %v212 = vld [vmem:[#allocation5 + $0x1b8] sm:$0xff]
    %v213 = vld [vmem:[#allocation5 + $0x1c0] sm:$0xff]
    %v214 = vld [vmem:[#allocation5 + $0x1c8] sm:$0xff]
    %v215 = vld [vmem:[#allocation5 + $0x1d0] sm:$0xff]
    %v216 = vld [vmem:[#allocation5 + $0x1d8] sm:$0xff]
    %v217 = vld [vmem:[#allocation5 + $0x1e0] sm:$0xff]
    %v218 = vld [vmem:[#allocation5 + $0x1e8] sm:$0xff]
    %v219 = vld [vmem:[#allocation5 + $0x1f0] sm:$0xff]
    %v220 = vld [vmem:[#allocation5 + $0x1f8] sm:$0xff]
    %v221 = vld [vmem:[#allocation7] sm:$0xf]
    %v223 = vperm.slane %v221, 0
    %v224 = vperm.slane %v221, 1
    %v225 = vperm.slane %v221, 2
    %v226 = vperm.slane %v221, 3
    %231 = vmatpush.msra.mxu0 %v217
    %232 = vmatpush.msra.mxu0 %v213
    %233 = vmatpush.msra.mxu0 %v209
    %234 = vmatpush.msra.mxu0 %v205
    %235 = vmatpush.msra.mxu0 %v201
    %236 = vmatpush.msra.mxu0 %v197
    %237 = vmatpush.msra.mxu0 %v193
    %238 = vmatpush.msra.mxu0 %v189
    %239 = vmatpush.msra.mxu0 %v185
    %240 = vmatpush.msra.mxu0 %v181
    %241 = vmatpush.msra.mxu0 %v177
    %242 = vmatpush.msra.mxu0 %v173
    %243 = vmatpush.msra.mxu0 %v169
    %244 = vmatpush.msra.mxu0 %v165
    %245 = vmatpush.msra.mxu0 %v161
    %246 = vmatpush.msra.mxu0 %v157
    %247 = vmatmul.f32.gmra.mxu0 %v156
    %v248 = vpop.f32.mrf.mxu0
    %v249 = vadd.f32 %v223, %v248
    %250 = vdwg.mxu0
    %251 = vmatpush.msra.mxu0 %v218
    %252 = vmatpush.msra.mxu0 %v214
    %253 = vmatpush.msra.mxu0 %v210
    %254 = vmatpush.msra.mxu0 %v206
    %255 = vmatpush.msra.mxu0 %v202
    %256 = vmatpush.msra.mxu0 %v198
    %257 = vmatpush.msra.mxu0 %v194
    %258 = vmatpush.msra.mxu0 %v190
    %259 = vmatpush.msra.mxu0 %v186
    %260 = vmatpush.msra.mxu0 %v182
    %261 = vmatpush.msra.mxu0 %v178
    %262 = vmatpush.msra.mxu0 %v174
    %263 = vmatpush.msra.mxu0 %v170
    %264 = vmatpush.msra.mxu0 %v166
    %265 = vmatpush.msra.mxu0 %v162
    %266 = vmatpush.msra.mxu0 %v158
    %267 = vmatmul.f32.gmra.mxu0 %v156
    %v268 = vpop.f32.mrf.mxu0
    %v269 = vadd.f32 %v224, %v268
    %270 = vdwg.mxu0
    %271 = vmatpush.msra.mxu0 %v219
    %272 = vmatpush.msra.mxu0 %v215
    %273 = vmatpush.msra.mxu0 %v211
    %274 = vmatpush.msra.mxu0 %v207
    %275 = vmatpush.msra.mxu0 %v203
    %276 = vmatpush.msra.mxu0 %v199
    %277 = vmatpush.msra.mxu0 %v195
    %278 = vmatpush.msra.mxu0 %v191
    %279 = vmatpush.msra.mxu0 %v187
    %280 = vmatpush.msra.mxu0 %v183
    %281 = vmatpush.msra.mxu0 %v179
    %282 = vmatpush.msra.mxu0 %v175
    %283 = vmatpush.msra.mxu0 %v171
    %284 = vmatpush.msra.mxu0 %v167
    %285 = vmatpush.msra.mxu0 %v163
    %286 = vmatpush.msra.mxu0 %v159
    %287 = vmatmul.f32.gmra.mxu0 %v156
    %v288 = vpop.f32.mrf.mxu0
    %v289 = vadd.f32 %v225, %v288
    %290 = vdwg.mxu0
    %291 = vmatpush.msra.mxu0 %v220
    %292 = vmatpush.msra.mxu0 %v216
    %293 = vmatpush.msra.mxu0 %v212
    %294 = vmatpush.msra.mxu0 %v208
    %295 = vmatpush.msra.mxu0 %v204
    %296 = vmatpush.msra.mxu0 %v200
    %297 = vmatpush.msra.mxu0 %v196
    %298 = vmatpush.msra.mxu0 %v192
    %299 = vmatpush.msra.mxu0 %v188
    %300 = vmatpush.msra.mxu0 %v184
    %301 = vmatpush.msra.mxu0 %v180
    %302 = vmatpush.msra.mxu0 %v176
    %303 = vmatpush.msra.mxu0 %v172
    %304 = vmatpush.msra.mxu0 %v168
    %305 = vmatpush.msra.mxu0 %v164
    %306 = vmatpush.msra.mxu0 %v160
    %307 = vmatmul.f32.gmra.mxu0 %v156
    %v308 = vpop.f32.mrf.mxu0
    %v309 = vadd.f32 %v226, %v308
    %310 = vdwg.mxu0
    %v311 = vxor.u32 %v249, 2147483648
    %v312 = vxor.u32 %v269, 2147483648
    %v313 = vxor.u32 %v289, 2147483648
    %v314 = vxor.u32 %v309, 2147483648
    %v315 = vmul.f32 %v311, 1.442695
    %v316 = vpow.pop %v315
    %v317 = vmul.f32 %v312, 1.442695
    %v318 = vpow.pop %v317
    %v319 = vmul.f32 %v313, 1.442695
    %v320 = vpow.pop %v319
    %v321 = vmul.f32 %v314, 1.442695
    %v322 = vpow.pop %v321
    %v323 = vadd.f32 %v316, 1.0
    %v324 = vadd.f32 %v318, 1.0
    %v325 = vadd.f32 %v320, 1.0
    %v326 = vadd.f32 %v322, 1.0
    %v327 = vrcp.pop %v323
    %v328 = vmul.f32 %v323, %v327
    %v329 = vsub.f32 1.0, %v328
    %v330 = vmul.f32 %v327, %v329
    %v331 = vadd.f32 %v327, %v330
    %vm332 = vweird.f32 %v323
    %vm333 = vweird.f32 %v327
    %vm334 = vmor %vm332, %vm333
    %v335 = vsel %vm334, %v327, %v331
    %v336 = vand.u32 2147483647, %v323
    %vm337 = vcmp.eq.f32.partialorder %v336, 8.507059e+37
    %v338 = vand.u32 %v323, 2147483648
    %v339 = vor.u32 1.1754944e-38, %v338
    %v340 = vsel %vm337, %v339, %v335
    %v341 = vmul.f32 1.0, %v340
    %v342 = vrcp.pop %v324
    %v343 = vmul.f32 %v324, %v342
    %v344 = vsub.f32 1.0, %v343
    %v345 = vmul.f32 %v342, %v344
    %v346 = vadd.f32 %v342, %v345
    %vm347 = vweird.f32 %v324
    %vm348 = vweird.f32 %v342
    %vm349 = vmor %vm347, %vm348
    %v350 = vsel %vm349, %v342, %v346
    %v351 = vand.u32 2147483647, %v324
    %vm352 = vcmp.eq.f32.partialorder %v351, 8.507059e+37
    %v353 = vand.u32 %v324, 2147483648
    %v354 = vor.u32 1.1754944e-38, %v353
    %v355 = vsel %vm352, %v354, %v350
    %v356 = vmul.f32 1.0, %v355
    %v357 = vrcp.pop %v325
    %v358 = vmul.f32 %v325, %v357
    %v359 = vsub.f32 1.0, %v358
    %v360 = vmul.f32 %v357, %v359
    %v361 = vadd.f32 %v357, %v360
    %vm362 = vweird.f32 %v325
    %vm363 = vweird.f32 %v357
    %vm364 = vmor %vm362, %vm363
    %v365 = vsel %vm364, %v357, %v361
    %v366 = vand.u32 2147483647, %v325
    %vm367 = vcmp.eq.f32.partialorder %v366, 8.507059e+37
    %v368 = vand.u32 %v325, 2147483648
    %v369 = vor.u32 1.1754944e-38, %v368
    %v370 = vsel %vm367, %v369, %v365
    %v371 = vmul.f32 1.0, %v370
    %v372 = vrcp.pop %v326
    %v373 = vmul.f32 %v326, %v372
    %v374 = vsub.f32 1.0, %v373
    %v375 = vmul.f32 %v372, %v374
    %v376 = vadd.f32 %v372, %v375
    %vm377 = vweird.f32 %v326
    %vm378 = vweird.f32 %v372
    %vm379 = vmor %vm377, %vm378
    %v380 = vsel %vm379, %v372, %v376
    %v381 = vand.u32 2147483647, %v326
    %vm382 = vcmp.eq.f32.partialorder %v381, 8.507059e+37
    %v383 = vand.u32 %v326, 2147483648
    %v384 = vor.u32 1.1754944e-38, %v383
    %v385 = vsel %vm382, %v384, %v380
    %v386 = vmul.f32 1.0, %v385
    %v387 = vmul.f32 %v249, %v341
    %v388 = vmul.f32 %v269, %v356
    %v389 = vmul.f32 %v289, %v371
    %v390 = vmul.f32 %v309, %v386
    %v391 = vld [vmem:[#allocation8] sm:$0xff]
    %v392 = vld [vmem:[#allocation8 + $0x8] sm:$0xff]
    %v393 = vld [vmem:[#allocation8 + $0x10] sm:$0xff]
    %v394 = vld [vmem:[#allocation8 + $0x18] sm:$0xff]
    %v395 = vld [vmem:[#allocation8 + $0x20] sm:$0xff]
    %v396 = vld [vmem:[#allocation8 + $0x28] sm:$0xff]
    %v397 = vld [vmem:[#allocation8 + $0x30] sm:$0xff]
    %v398 = vld [vmem:[#allocation8 + $0x38] sm:$0xff]
    %v399 = vld [vmem:[#allocation8 + $0x40] sm:$0xff]
    %v400 = vld [vmem:[#allocation8 + $0x48] sm:$0xff]
    %v401 = vld [vmem:[#allocation8 + $0x50] sm:$0xff]
    %v402 = vld [vmem:[#allocation8 + $0x58] sm:$0xff]
    %v403 = vld [vmem:[#allocation8 + $0x60] sm:$0xff]
    %v404 = vld [vmem:[#allocation8 + $0x68] sm:$0xff]
    %v405 = vld [vmem:[#allocation8 + $0x70] sm:$0xff]
    %v406 = vld [vmem:[#allocation8 + $0x78] sm:$0xff]
    %v407 = vld [vmem:[#allocation8 + $0x80] sm:$0xff]
    %v408 = vld [vmem:[#allocation8 + $0x88] sm:$0xff]
    %v409 = vld [vmem:[#allocation8 + $0x90] sm:$0xff]
    %v410 = vld [vmem:[#allocation8 + $0x98] sm:$0xff]
    %v411 = vld [vmem:[#allocation8 + $0xa0] sm:$0xff]
    %v412 = vld [vmem:[#allocation8 + $0xa8] sm:$0xff]
    %v413 = vld [vmem:[#allocation8 + $0xb0] sm:$0xff]
    %v414 = vld [vmem:[#allocation8 + $0xb8] sm:$0xff]
    %v415 = vld [vmem:[#allocation8 + $0xc0] sm:$0xff]
    %v416 = vld [vmem:[#allocation8 + $0xc8] sm:$0xff]
    %v417 = vld [vmem:[#allocation8 + $0xd0] sm:$0xff]
    %v418 = vld [vmem:[#allocation8 + $0xd8] sm:$0xff]
    %v419 = vld [vmem:[#allocation8 + $0xe0] sm:$0xff]
    %v420 = vld [vmem:[#allocation8 + $0xe8] sm:$0xff]
    %v421 = vld [vmem:[#allocation8 + $0xf0] sm:$0xff]
    %v422 = vld [vmem:[#allocation8 + $0xf8] sm:$0xff]
    %v423 = vld [vmem:[#allocation8 + $0x100] sm:$0xff]
    %v424 = vld [vmem:[#allocation8 + $0x108] sm:$0xff]
    %v425 = vld [vmem:[#allocation8 + $0x110] sm:$0xff]
    %v426 = vld [vmem:[#allocation8 + $0x118] sm:$0xff]
    %v427 = vld [vmem:[#allocation8 + $0x120] sm:$0xff]
    %v428 = vld [vmem:[#allocation8 + $0x128] sm:$0xff]
    %v429 = vld [vmem:[#allocation8 + $0x130] sm:$0xff]
    %v430 = vld [vmem:[#allocation8 + $0x138] sm:$0xff]
    %v431 = vld [vmem:[#allocation8 + $0x140] sm:$0xff]
    %v432 = vld [vmem:[#allocation8 + $0x148] sm:$0xff]
    %v433 = vld [vmem:[#allocation8 + $0x150] sm:$0xff]
    %v434 = vld [vmem:[#allocation8 + $0x158] sm:$0xff]
    %v435 = vld [vmem:[#allocation8 + $0x160] sm:$0xff]
    %v436 = vld [vmem:[#allocation8 + $0x168] sm:$0xff]
    %v437 = vld [vmem:[#allocation8 + $0x170] sm:$0xff]
    %v438 = vld [vmem:[#allocation8 + $0x178] sm:$0xff]
    %v439 = vld [vmem:[#allocation8 + $0x180] sm:$0xff]
    %v440 = vld [vmem:[#allocation8 + $0x188] sm:$0xff]
    %v441 = vld [vmem:[#allocation8 + $0x190] sm:$0xff]
    %v442 = vld [vmem:[#allocation8 + $0x198] sm:$0xff]
    %v443 = vld [vmem:[#allocation8 + $0x1a0] sm:$0xff]
    %v444 = vld [vmem:[#allocation8 + $0x1a8] sm:$0xff]
    %v445 = vld [vmem:[#allocation8 + $0x1b0] sm:$0xff]
    %v446 = vld [vmem:[#allocation8 + $0x1b8] sm:$0xff]
    %v447 = vld [vmem:[#allocation8 + $0x1c0] sm:$0xff]
    %v448 = vld [vmem:[#allocation8 + $0x1c8] sm:$0xff]
    %v449 = vld [vmem:[#allocation8 + $0x1d0] sm:$0xff]
    %v450 = vld [vmem:[#allocation8 + $0x1d8] sm:$0xff]
    %v451 = vld [vmem:[#allocation8 + $0x1e0] sm:$0xff]
    %v452 = vld [vmem:[#allocation8 + $0x1e8] sm:$0xff]
    %v453 = vld [vmem:[#allocation8 + $0x1f0] sm:$0xff]
    %v454 = vld [vmem:[#allocation8 + $0x1f8] sm:$0xff]
    %v455 = vld [vmem:[#allocation8 + $0x200] sm:$0xff]
    %v456 = vld [vmem:[#allocation8 + $0x208] sm:$0xff]
    %v457 = vld [vmem:[#allocation8 + $0x210] sm:$0xff]
    %v458 = vld [vmem:[#allocation8 + $0x218] sm:$0xff]
    %v459 = vld [vmem:[#allocation8 + $0x220] sm:$0xff]
    %v460 = vld [vmem:[#allocation8 + $0x228] sm:$0xff]
    %v461 = vld [vmem:[#allocation8 + $0x230] sm:$0xff]
    %v462 = vld [vmem:[#allocation8 + $0x238] sm:$0xff]
    %v463 = vld [vmem:[#allocation8 + $0x240] sm:$0xff]
    %v464 = vld [vmem:[#allocation8 + $0x248] sm:$0xff]
    %v465 = vld [vmem:[#allocation8 + $0x250] sm:$0xff]
    %v466 = vld [vmem:[#allocation8 + $0x258] sm:$0xff]
    %v467 = vld [vmem:[#allocation8 + $0x260] sm:$0xff]
    %v468 = vld [vmem:[#allocation8 + $0x268] sm:$0xff]
    %v469 = vld [vmem:[#allocation8 + $0x270] sm:$0xff]
    %v470 = vld [vmem:[#allocation8 + $0x278] sm:$0xff]
    %v471 = vld [vmem:[#allocation8 + $0x280] sm:$0xff]
    %v472 = vld [vmem:[#allocation8 + $0x288] sm:$0xff]
    %v473 = vld [vmem:[#allocation8 + $0x290] sm:$0xff]
    %v474 = vld [vmem:[#allocation8 + $0x298] sm:$0xff]
    %v475 = vld [vmem:[#allocation8 + $0x2a0] sm:$0xff]
    %v476 = vld [vmem:[#allocation8 + $0x2a8] sm:$0xff]
    %v477 = vld [vmem:[#allocation8 + $0x2b0] sm:$0xff]
    %v478 = vld [vmem:[#allocation8 + $0x2b8] sm:$0xff]
    %v479 = vld [vmem:[#allocation8 + $0x2c0] sm:$0xff]
    %v480 = vld [vmem:[#allocation8 + $0x2c8] sm:$0xff]
    %v481 = vld [vmem:[#allocation8 + $0x2d0] sm:$0xff]
    %v482 = vld [vmem:[#allocation8 + $0x2d8] sm:$0xff]
    %v483 = vld [vmem:[#allocation8 + $0x2e0] sm:$0xff]
    %v484 = vld [vmem:[#allocation8 + $0x2e8] sm:$0xff]
    %v485 = vld [vmem:[#allocation8 + $0x2f0] sm:$0xff]
    %v486 = vld [vmem:[#allocation8 + $0x2f8] sm:$0xff]
    %v487 = vld [vmem:[#allocation8 + $0x300] sm:$0xff]
    %v488 = vld [vmem:[#allocation8 + $0x308] sm:$0xff]
    %v489 = vld [vmem:[#allocation8 + $0x310] sm:$0xff]
    %v490 = vld [vmem:[#allocation8 + $0x318] sm:$0xff]
    %v491 = vld [vmem:[#allocation8 + $0x320] sm:$0xff]
    %v492 = vld [vmem:[#allocation8 + $0x328] sm:$0xff]
    %v493 = vld [vmem:[#allocation8 + $0x330] sm:$0xff]
    %v494 = vld [vmem:[#allocation8 + $0x338] sm:$0xff]
    %v495 = vld [vmem:[#allocation8 + $0x340] sm:$0xff]
    %v496 = vld [vmem:[#allocation8 + $0x348] sm:$0xff]
    %v497 = vld [vmem:[#allocation8 + $0x350] sm:$0xff]
    %v498 = vld [vmem:[#allocation8 + $0x358] sm:$0xff]
    %v499 = vld [vmem:[#allocation8 + $0x360] sm:$0xff]
    %v500 = vld [vmem:[#allocation8 + $0x368] sm:$0xff]
    %v501 = vld [vmem:[#allocation8 + $0x370] sm:$0xff]
    %v502 = vld [vmem:[#allocation8 + $0x378] sm:$0xff]
    %v503 = vld [vmem:[#allocation8 + $0x380] sm:$0xff]
    %v504 = vld [vmem:[#allocation8 + $0x388] sm:$0xff]
    %v505 = vld [vmem:[#allocation8 + $0x390] sm:$0xff]
    %v506 = vld [vmem:[#allocation8 + $0x398] sm:$0xff]
    %v507 = vld [vmem:[#allocation8 + $0x3a0] sm:$0xff]
    %v508 = vld [vmem:[#allocation8 + $0x3a8] sm:$0xff]
    %v509 = vld [vmem:[#allocation8 + $0x3b0] sm:$0xff]
    %v510 = vld [vmem:[#allocation8 + $0x3b8] sm:$0xff]
    %v511 = vld [vmem:[#allocation8 + $0x3c0] sm:$0xff]
    %v512 = vld [vmem:[#allocation8 + $0x3c8] sm:$0xff]
    %v513 = vld [vmem:[#allocation8 + $0x3d0] sm:$0xff]
    %v514 = vld [vmem:[#allocation8 + $0x3d8] sm:$0xff]
    %v515 = vld [vmem:[#allocation8 + $0x3e0] sm:$0xff]
    %v516 = vld [vmem:[#allocation8 + $0x3e8] sm:$0xff]
    %v517 = vld [vmem:[#allocation8 + $0x3f0] sm:$0xff]
    %v518 = vld [vmem:[#allocation8 + $0x3f8] sm:$0xff]
    %v519 = vld [vmem:[#allocation8 + $0x400] sm:$0xff]
    %v520 = vld [vmem:[#allocation8 + $0x408] sm:$0xff]
    %v521 = vld [vmem:[#allocation8 + $0x410] sm:$0xff]
    %v522 = vld [vmem:[#allocation8 + $0x418] sm:$0xff]
    %v523 = vld [vmem:[#allocation8 + $0x420] sm:$0xff]
    %v524 = vld [vmem:[#allocation8 + $0x428] sm:$0xff]
    %v525 = vld [vmem:[#allocation8 + $0x430] sm:$0xff]
    %v526 = vld [vmem:[#allocation8 + $0x438] sm:$0xff]
    %v527 = vld [vmem:[#allocation8 + $0x440] sm:$0xff]
    %v528 = vld [vmem:[#allocation8 + $0x448] sm:$0xff]
    %v529 = vld [vmem:[#allocation8 + $0x450] sm:$0xff]
    %v530 = vld [vmem:[#allocation8 + $0x458] sm:$0xff]
    %v531 = vld [vmem:[#allocation8 + $0x460] sm:$0xff]
    %v532 = vld [vmem:[#allocation8 + $0x468] sm:$0xff]
    %v533 = vld [vmem:[#allocation8 + $0x470] sm:$0xff]
    %v534 = vld [vmem:[#allocation8 + $0x478] sm:$0xff]
    %v535 = vld [vmem:[#allocation8 + $0x480] sm:$0xff]
    %v536 = vld [vmem:[#allocation8 + $0x488] sm:$0xff]
    %v537 = vld [vmem:[#allocation8 + $0x490] sm:$0xff]
    %v538 = vld [vmem:[#allocation8 + $0x498] sm:$0xff]
    %v539 = vld [vmem:[#allocation8 + $0x4a0] sm:$0xff]
    %v540 = vld [vmem:[#allocation8 + $0x4a8] sm:$0xff]
    %v541 = vld [vmem:[#allocation8 + $0x4b0] sm:$0xff]
    %v542 = vld [vmem:[#allocation8 + $0x4b8] sm:$0xff]
    %v543 = vld [vmem:[#allocation8 + $0x4c0] sm:$0xff]
    %v544 = vld [vmem:[#allocation8 + $0x4c8] sm:$0xff]
    %v545 = vld [vmem:[#allocation8 + $0x4d0] sm:$0xff]
    %v546 = vld [vmem:[#allocation8 + $0x4d8] sm:$0xff]
    %v547 = vld [vmem:[#allocation8 + $0x4e0] sm:$0xff]
    %v548 = vld [vmem:[#allocation8 + $0x4e8] sm:$0xff]
    %v549 = vld [vmem:[#allocation8 + $0x4f0] sm:$0xff]
    %v550 = vld [vmem:[#allocation8 + $0x4f8] sm:$0xff]
    %v551 = vld [vmem:[#allocation8 + $0x500] sm:$0xff]
    %v552 = vld [vmem:[#allocation8 + $0x508] sm:$0xff]
    %v553 = vld [vmem:[#allocation8 + $0x510] sm:$0xff]
    %v554 = vld [vmem:[#allocation8 + $0x518] sm:$0xff]
    %v555 = vld [vmem:[#allocation8 + $0x520] sm:$0xff]
    %v556 = vld [vmem:[#allocation8 + $0x528] sm:$0xff]
    %v557 = vld [vmem:[#allocation8 + $0x530] sm:$0xff]
    %v558 = vld [vmem:[#allocation8 + $0x538] sm:$0xff]
    %v559 = vld [vmem:[#allocation8 + $0x540] sm:$0xff]
    %v560 = vld [vmem:[#allocation8 + $0x548] sm:$0xff]
    %v561 = vld [vmem:[#allocation8 + $0x550] sm:$0xff]
    %v562 = vld [vmem:[#allocation8 + $0x558] sm:$0xff]
    %v563 = vld [vmem:[#allocation8 + $0x560] sm:$0xff]
    %v564 = vld [vmem:[#allocation8 + $0x568] sm:$0xff]
    %v565 = vld [vmem:[#allocation8 + $0x570] sm:$0xff]
    %v566 = vld [vmem:[#allocation8 + $0x578] sm:$0xff]
    %v567 = vld [vmem:[#allocation8 + $0x580] sm:$0xff]
    %v568 = vld [vmem:[#allocation8 + $0x588] sm:$0xff]
    %v569 = vld [vmem:[#allocation8 + $0x590] sm:$0xff]
    %v570 = vld [vmem:[#allocation8 + $0x598] sm:$0xff]
    %v571 = vld [vmem:[#allocation8 + $0x5a0] sm:$0xff]
    %v572 = vld [vmem:[#allocation8 + $0x5a8] sm:$0xff]
    %v573 = vld [vmem:[#allocation8 + $0x5b0] sm:$0xff]
    %v574 = vld [vmem:[#allocation8 + $0x5b8] sm:$0xff]
    %v575 = vld [vmem:[#allocation8 + $0x5c0] sm:$0xff]
    %v576 = vld [vmem:[#allocation8 + $0x5c8] sm:$0xff]
    %v577 = vld [vmem:[#allocation8 + $0x5d0] sm:$0xff]
    %v578 = vld [vmem:[#allocation8 + $0x5d8] sm:$0xff]
    %v579 = vld [vmem:[#allocation8 + $0x5e0] sm:$0xff]
    %v580 = vld [vmem:[#allocation8 + $0x5e8] sm:$0xff]
    %v581 = vld [vmem:[#allocation8 + $0x5f0] sm:$0xff]
    %v582 = vld [vmem:[#allocation8 + $0x5f8] sm:$0xff]
    %v583 = vld [vmem:[#allocation8 + $0x600] sm:$0xff]
    %v584 = vld [vmem:[#allocation8 + $0x608] sm:$0xff]
    %v585 = vld [vmem:[#allocation8 + $0x610] sm:$0xff]
    %v586 = vld [vmem:[#allocation8 + $0x618] sm:$0xff]
    %v587 = vld [vmem:[#allocation8 + $0x620] sm:$0xff]
    %v588 = vld [vmem:[#allocation8 + $0x628] sm:$0xff]
    %v589 = vld [vmem:[#allocation8 + $0x630] sm:$0xff]
    %v590 = vld [vmem:[#allocation8 + $0x638] sm:$0xff]
    %v591 = vld [vmem:[#allocation8 + $0x640] sm:$0xff]
    %v592 = vld [vmem:[#allocation8 + $0x648] sm:$0xff]
    %v593 = vld [vmem:[#allocation8 + $0x650] sm:$0xff]
    %v594 = vld [vmem:[#allocation8 + $0x658] sm:$0xff]
    %v595 = vld [vmem:[#allocation8 + $0x660] sm:$0xff]
    %v596 = vld [vmem:[#allocation8 + $0x668] sm:$0xff]
    %v597 = vld [vmem:[#allocation8 + $0x670] sm:$0xff]
    %v598 = vld [vmem:[#allocation8 + $0x678] sm:$0xff]
    %v599 = vld [vmem:[#allocation8 + $0x680] sm:$0xff]
    %v600 = vld [vmem:[#allocation8 + $0x688] sm:$0xff]
    %v601 = vld [vmem:[#allocation8 + $0x690] sm:$0xff]
    %v602 = vld [vmem:[#allocation8 + $0x698] sm:$0xff]
    %v603 = vld [vmem:[#allocation8 + $0x6a0] sm:$0xff]
    %v604 = vld [vmem:[#allocation8 + $0x6a8] sm:$0xff]
    %v605 = vld [vmem:[#allocation8 + $0x6b0] sm:$0xff]
    %v606 = vld [vmem:[#allocation8 + $0x6b8] sm:$0xff]
    %v607 = vld [vmem:[#allocation8 + $0x6c0] sm:$0xff]
    %v608 = vld [vmem:[#allocation8 + $0x6c8] sm:$0xff]
    %v609 = vld [vmem:[#allocation8 + $0x6d0] sm:$0xff]
    %v610 = vld [vmem:[#allocation8 + $0x6d8] sm:$0xff]
    %v611 = vld [vmem:[#allocation8 + $0x6e0] sm:$0xff]
    %v612 = vld [vmem:[#allocation8 + $0x6e8] sm:$0xff]
    %v613 = vld [vmem:[#allocation8 + $0x6f0] sm:$0xff]
    %v614 = vld [vmem:[#allocation8 + $0x6f8] sm:$0xff]
    %v615 = vld [vmem:[#allocation8 + $0x700] sm:$0xff]
    %v616 = vld [vmem:[#allocation8 + $0x708] sm:$0xff]
    %v617 = vld [vmem:[#allocation8 + $0x710] sm:$0xff]
    %v618 = vld [vmem:[#allocation8 + $0x718] sm:$0xff]
    %v619 = vld [vmem:[#allocation8 + $0x720] sm:$0xff]
    %v620 = vld [vmem:[#allocation8 + $0x728] sm:$0xff]
    %v621 = vld [vmem:[#allocation8 + $0x730] sm:$0xff]
    %v622 = vld [vmem:[#allocation8 + $0x738] sm:$0xff]
    %v623 = vld [vmem:[#allocation8 + $0x740] sm:$0xff]
    %v624 = vld [vmem:[#allocation8 + $0x748] sm:$0xff]
    %v625 = vld [vmem:[#allocation8 + $0x750] sm:$0xff]
    %v626 = vld [vmem:[#allocation8 + $0x758] sm:$0xff]
    %v627 = vld [vmem:[#allocation8 + $0x760] sm:$0xff]
    %v628 = vld [vmem:[#allocation8 + $0x768] sm:$0xff]
    %v629 = vld [vmem:[#allocation8 + $0x770] sm:$0xff]
    %v630 = vld [vmem:[#allocation8 + $0x778] sm:$0xff]
    %v631 = vld [vmem:[#allocation8 + $0x780] sm:$0xff]
    %v632 = vld [vmem:[#allocation8 + $0x788] sm:$0xff]
    %v633 = vld [vmem:[#allocation8 + $0x790] sm:$0xff]
    %v634 = vld [vmem:[#allocation8 + $0x798] sm:$0xff]
    %v635 = vld [vmem:[#allocation8 + $0x7a0] sm:$0xff]
    %v636 = vld [vmem:[#allocation8 + $0x7a8] sm:$0xff]
    %v637 = vld [vmem:[#allocation8 + $0x7b0] sm:$0xff]
    %v638 = vld [vmem:[#allocation8 + $0x7b8] sm:$0xff]
    %v639 = vld [vmem:[#allocation8 + $0x7c0] sm:$0xff]
    %v640 = vld [vmem:[#allocation8 + $0x7c8] sm:$0xff]
    %v641 = vld [vmem:[#allocation8 + $0x7d0] sm:$0xff]
    %v642 = vld [vmem:[#allocation8 + $0x7d8] sm:$0xff]
    %v643 = vld [vmem:[#allocation8 + $0x7e0] sm:$0xff]
    %v644 = vld [vmem:[#allocation8 + $0x7e8] sm:$0xff]
    %v645 = vld [vmem:[#allocation8 + $0x7f0] sm:$0xff]
    %v646 = vld [vmem:[#allocation8 + $0x7f8] sm:$0xff]
    %v647 = vld [vmem:[#allocation10] sm:$0xf]
    %v649 = vperm.slane %v647, 0
    %v650 = vperm.slane %v647, 1
    %v651 = vperm.slane %v647, 2
    %v652 = vperm.slane %v647, 3
    %657 = vmatpush.msra.mxu0 %v451
    %658 = vmatpush.msra.mxu0 %v447
    %659 = vmatpush.msra.mxu0 %v443
    %660 = vmatpush.msra.mxu0 %v439
    %661 = vmatpush.msra.mxu0 %v435
    %662 = vmatpush.msra.mxu0 %v431
    %663 = vmatpush.msra.mxu0 %v427
    %664 = vmatpush.msra.mxu0 %v423
    %665 = vmatpush.msra.mxu0 %v419
    %666 = vmatpush.msra.mxu0 %v415
    %667 = vmatpush.msra.mxu0 %v411
    %668 = vmatpush.msra.mxu0 %v407
    %669 = vmatpush.msra.mxu0 %v403
    %670 = vmatpush.msra.mxu0 %v399
    %671 = vmatpush.msra.mxu0 %v395
    %672 = vmatpush.msra.mxu0 %v391
    %673 = vmatmul.f32.gmra.mxu0 %v387
    %v674 = vpop.f32.mrf.mxu0
    %v675 = vadd.f32 %v649, %v674
    %676 = vdwg.mxu0
    %677 = vmatpush.msra.mxu0 %v515
    %678 = vmatpush.msra.mxu0 %v511
    %679 = vmatpush.msra.mxu0 %v507
    %680 = vmatpush.msra.mxu0 %v503
    %681 = vmatpush.msra.mxu0 %v499
    %682 = vmatpush.msra.mxu0 %v495
    %683 = vmatpush.msra.mxu0 %v491
    %684 = vmatpush.msra.mxu0 %v487
    %685 = vmatpush.msra.mxu0 %v483
    %686 = vmatpush.msra.mxu0 %v479
    %687 = vmatpush.msra.mxu0 %v475
    %688 = vmatpush.msra.mxu0 %v471
    %689 = vmatpush.msra.mxu0 %v467
    %690 = vmatpush.msra.mxu0 %v463
    %691 = vmatpush.msra.mxu0 %v459
    %692 = vmatpush.msra.mxu0 %v455
    %693 = vmatmul.f32.gmra.mxu0 %v388
    %v694 = vpop.f32.mrf.mxu0
    %v695 = vadd.f32 %v675, %v694
    %696 = vdwg.mxu0
    %697 = vmatpush.msra.mxu0 %v579
    %698 = vmatpush.msra.mxu0 %v575
    %699 = vmatpush.msra.mxu0 %v571
    %700 = vmatpush.msra.mxu0 %v567
    %701 = vmatpush.msra.mxu0 %v563
    %702 = vmatpush.msra.mxu0 %v559
    %703 = vmatpush.msra.mxu0 %v555
    %704 = vmatpush.msra.mxu0 %v551
    %705 = vmatpush.msra.mxu0 %v547
    %706 = vmatpush.msra.mxu0 %v543
    %707 = vmatpush.msra.mxu0 %v539
    %708 = vmatpush.msra.mxu0 %v535
    %709 = vmatpush.msra.mxu0 %v531
    %710 = vmatpush.msra.mxu0 %v527
    %711 = vmatpush.msra.mxu0 %v523
    %712 = vmatpush.msra.mxu0 %v519
    %713 = vmatmul.f32.gmra.mxu0 %v389
    %v714 = vpop.f32.mrf.mxu0
    %v715 = vadd.f32 %v695, %v714
    %716 = vdwg.mxu0
    %717 = vmatpush.msra.mxu0 %v643
    %718 = vmatpush.msra.mxu0 %v639
    %719 = vmatpush.msra.mxu0 %v635
    %720 = vmatpush.msra.mxu0 %v631
    %721 = vmatpush.msra.mxu0 %v627
    %722 = vmatpush.msra.mxu0 %v623
    %723 = vmatpush.msra.mxu0 %v619
    %724 = vmatpush.msra.mxu0 %v615
    %725 = vmatpush.msra.mxu0 %v611
    %726 = vmatpush.msra.mxu0 %v607
    %727 = vmatpush.msra.mxu0 %v603
    %728 = vmatpush.msra.mxu0 %v599
    %729 = vmatpush.msra.mxu0 %v595
    %730 = vmatpush.msra.mxu0 %v591
    %731 = vmatpush.msra.mxu0 %v587
    %732 = vmatpush.msra.mxu0 %v583
    %733 = vmatmul.f32.gmra.mxu0 %v390
    %v734 = vpop.f32.mrf.mxu0
    %v735 = vadd.f32 %v715, %v734
    %736 = vdwg.mxu0
    %737 = vmatpush.msra.mxu0 %v452
    %738 = vmatpush.msra.mxu0 %v448
    %739 = vmatpush.msra.mxu0 %v444
    %740 = vmatpush.msra.mxu0 %v440
    %741 = vmatpush.msra.mxu0 %v436
    %742 = vmatpush.msra.mxu0 %v432
    %743 = vmatpush.msra.mxu0 %v428
    %744 = vmatpush.msra.mxu0 %v424
    %745 = vmatpush.msra.mxu0 %v420
    %746 = vmatpush.msra.mxu0 %v416
    %747 = vmatpush.msra.mxu0 %v412
    %748 = vmatpush.msra.mxu0 %v408
    %749 = vmatpush.msra.mxu0 %v404
    %750 = vmatpush.msra.mxu0 %v400
    %751 = vmatpush.msra.mxu0 %v396
    %752 = vmatpush.msra.mxu0 %v392
    %753 = vmatmul.f32.gmra.mxu0 %v387
    %v754 = vpop.f32.mrf.mxu0
    %v755 = vadd.f32 %v650, %v754
    %756 = vdwg.mxu0
    %757 = vmatpush.msra.mxu0 %v516
    %758 = vmatpush.msra.mxu0 %v512
    %759 = vmatpush.msra.mxu0 %v508
    %760 = vmatpush.msra.mxu0 %v504
    %761 = vmatpush.msra.mxu0 %v500
    %762 = vmatpush.msra.mxu0 %v496
    %763 = vmatpush.msra.mxu0 %v492
    %764 = vmatpush.msra.mxu0 %v488
    %765 = vmatpush.msra.mxu0 %v484
    %766 = vmatpush.msra.mxu0 %v480
    %767 = vmatpush.msra.mxu0 %v476
    %768 = vmatpush.msra.mxu0 %v472
    %769 = vmatpush.msra.mxu0 %v468
    %770 = vmatpush.msra.mxu0 %v464
    %771 = vmatpush.msra.mxu0 %v460
    %772 = vmatpush.msra.mxu0 %v456
    %773 = vmatmul.f32.gmra.mxu0 %v388
    %v774 = vpop.f32.mrf.mxu0
    %v775 = vadd.f32 %v755, %v774
    %776 = vdwg.mxu0
    %777 = vmatpush.msra.mxu0 %v580
    %778 = vmatpush.msra.mxu0 %v576
    %779 = vmatpush.msra.mxu0 %v572
    %780 = vmatpush.msra.mxu0 %v568
    %781 = vmatpush.msra.mxu0 %v564
    %782 = vmatpush.msra.mxu0 %v560
    %783 = vmatpush.msra.mxu0 %v556
    %784 = vmatpush.msra.mxu0 %v552
    %785 = vmatpush.msra.mxu0 %v548
    %786 = vmatpush.msra.mxu0 %v544
    %787 = vmatpush.msra.mxu0 %v540
    %788 = vmatpush.msra.mxu0 %v536
    %789 = vmatpush.msra.mxu0 %v532
    %790 = vmatpush.msra.mxu0 %v528
    %791 = vmatpush.msra.mxu0 %v524
    %792 = vmatpush.msra.mxu0 %v520
    %793 = vmatmul.f32.gmra.mxu0 %v389
    %v794 = vpop.f32.mrf.mxu0
    %v795 = vadd.f32 %v775, %v794
    %796 = vdwg.mxu0
    %797 = vmatpush.msra.mxu0 %v644
    %798 = vmatpush.msra.mxu0 %v640
    %799 = vmatpush.msra.mxu0 %v636
    %800 = vmatpush.msra.mxu0 %v632
    %801 = vmatpush.msra.mxu0 %v628
    %802 = vmatpush.msra.mxu0 %v624
    %803 = vmatpush.msra.mxu0 %v620
    %804 = vmatpush.msra.mxu0 %v616
    %805 = vmatpush.msra.mxu0 %v612
    %806 = vmatpush.msra.mxu0 %v608
    %807 = vmatpush.msra.mxu0 %v604
    %808 = vmatpush.msra.mxu0 %v600
    %809 = vmatpush.msra.mxu0 %v596
    %810 = vmatpush.msra.mxu0 %v592
    %811 = vmatpush.msra.mxu0 %v588
    %812 = vmatpush.msra.mxu0 %v584
    %813 = vmatmul.f32.gmra.mxu0 %v390
    %v814 = vpop.f32.mrf.mxu0
    %v815 = vadd.f32 %v795, %v814
    %816 = vdwg.mxu0
    %817 = vmatpush.msra.mxu0 %v453
    %818 = vmatpush.msra.mxu0 %v449
    %819 = vmatpush.msra.mxu0 %v445
    %820 = vmatpush.msra.mxu0 %v441
    %821 = vmatpush.msra.mxu0 %v437
    %822 = vmatpush.msra.mxu0 %v433
    %823 = vmatpush.msra.mxu0 %v429
    %824 = vmatpush.msra.mxu0 %v425
    %825 = vmatpush.msra.mxu0 %v421
    %826 = vmatpush.msra.mxu0 %v417
    %827 = vmatpush.msra.mxu0 %v413
    %828 = vmatpush.msra.mxu0 %v409
    %829 = vmatpush.msra.mxu0 %v405
    %830 = vmatpush.msra.mxu0 %v401
    %831 = vmatpush.msra.mxu0 %v397
    %832 = vmatpush.msra.mxu0 %v393
    %833 = vmatmul.f32.gmra.mxu0 %v387
    %v834 = vpop.f32.mrf.mxu0
    %v835 = vadd.f32 %v651, %v834
    %836 = vdwg.mxu0
    %837 = vmatpush.msra.mxu0 %v517
    %838 = vmatpush.msra.mxu0 %v513
    %839 = vmatpush.msra.mxu0 %v509
    %840 = vmatpush.msra.mxu0 %v505
    %841 = vmatpush.msra.mxu0 %v501
    %842 = vmatpush.msra.mxu0 %v497
    %843 = vmatpush.msra.mxu0 %v493
    %844 = vmatpush.msra.mxu0 %v489
    %845 = vmatpush.msra.mxu0 %v485
    %846 = vmatpush.msra.mxu0 %v481
    %847 = vmatpush.msra.mxu0 %v477
    %848 = vmatpush.msra.mxu0 %v473
    %849 = vmatpush.msra.mxu0 %v469
    %850 = vmatpush.msra.mxu0 %v465
    %851 = vmatpush.msra.mxu0 %v461
    %852 = vmatpush.msra.mxu0 %v457
    %853 = vmatmul.f32.gmra.mxu0 %v388
    %v854 = vpop.f32.mrf.mxu0
    %v855 = vadd.f32 %v835, %v854
    %856 = vdwg.mxu0
    %857 = vmatpush.msra.mxu0 %v581
    %858 = vmatpush.msra.mxu0 %v577
    %859 = vmatpush.msra.mxu0 %v573
    %860 = vmatpush.msra.mxu0 %v569
    %861 = vmatpush.msra.mxu0 %v565
    %862 = vmatpush.msra.mxu0 %v561
    %863 = vmatpush.msra.mxu0 %v557
    %864 = vmatpush.msra.mxu0 %v553
    %865 = vmatpush.msra.mxu0 %v549
    %866 = vmatpush.msra.mxu0 %v545
    %867 = vmatpush.msra.mxu0 %v541
    %868 = vmatpush.msra.mxu0 %v537
    %869 = vmatpush.msra.mxu0 %v533
    %870 = vmatpush.msra.mxu0 %v529
    %871 = vmatpush.msra.mxu0 %v525
    %872 = vmatpush.msra.mxu0 %v521
    %873 = vmatmul.f32.gmra.mxu0 %v389
    %v874 = vpop.f32.mrf.mxu0
    %v875 = vadd.f32 %v855, %v874
    %876 = vdwg.mxu0
    %877 = vmatpush.msra.mxu0 %v645
    %878 = vmatpush.msra.mxu0 %v641
    %879 = vmatpush.msra.mxu0 %v637
    %880 = vmatpush.msra.mxu0 %v633
    %881 = vmatpush.msra.mxu0 %v629
    %882 = vmatpush.msra.mxu0 %v625
    %883 = vmatpush.msra.mxu0 %v621
    %884 = vmatpush.msra.mxu0 %v617
    %885 = vmatpush.msra.mxu0 %v613
    %886 = vmatpush.msra.mxu0 %v609
    %887 = vmatpush.msra.mxu0 %v605
    %888 = vmatpush.msra.mxu0 %v601
    %889 = vmatpush.msra.mxu0 %v597
    %890 = vmatpush.msra.mxu0 %v593
    %891 = vmatpush.msra.mxu0 %v589
    %892 = vmatpush.msra.mxu0 %v585
    %893 = vmatmul.f32.gmra.mxu0 %v390
    %v894 = vpop.f32.mrf.mxu0
    %v895 = vadd.f32 %v875, %v894
    %896 = vdwg.mxu0
    %897 = vmatpush.msra.mxu0 %v454
    %898 = vmatpush.msra.mxu0 %v450
    %899 = vmatpush.msra.mxu0 %v446
    %900 = vmatpush.msra.mxu0 %v442
    %901 = vmatpush.msra.mxu0 %v438
    %902 = vmatpush.msra.mxu0 %v434
    %903 = vmatpush.msra.mxu0 %v430
    %904 = vmatpush.msra.mxu0 %v426
    %905 = vmatpush.msra.mxu0 %v422
    %906 = vmatpush.msra.mxu0 %v418
    %907 = vmatpush.msra.mxu0 %v414
    %908 = vmatpush.msra.mxu0 %v410
    %909 = vmatpush.msra.mxu0 %v406
    %910 = vmatpush.msra.mxu0 %v402
    %911 = vmatpush.msra.mxu0 %v398
    %912 = vmatpush.msra.mxu0 %v394
    %913 = vmatmul.f32.gmra.mxu0 %v387
    %v914 = vpop.f32.mrf.mxu0
    %v915 = vadd.f32 %v652, %v914
    %916 = vdwg.mxu0
    %917 = vmatpush.msra.mxu0 %v518
    %918 = vmatpush.msra.mxu0 %v514
    %919 = vmatpush.msra.mxu0 %v510
    %920 = vmatpush.msra.mxu0 %v506
    %921 = vmatpush.msra.mxu0 %v502
    %922 = vmatpush.msra.mxu0 %v498
    %923 = vmatpush.msra.mxu0 %v494
    %924 = vmatpush.msra.mxu0 %v490
    %925 = vmatpush.msra.mxu0 %v486
    %926 = vmatpush.msra.mxu0 %v482
    %927 = vmatpush.msra.mxu0 %v478
    %928 = vmatpush.msra.mxu0 %v474
    %929 = vmatpush.msra.mxu0 %v470
    %930 = vmatpush.msra.mxu0 %v466
    %931 = vmatpush.msra.mxu0 %v462
    %932 = vmatpush.msra.mxu0 %v458
    %933 = vmatmul.f32.gmra.mxu0 %v388
    %v934 = vpop.f32.mrf.mxu0
    %v935 = vadd.f32 %v915, %v934
    %936 = vdwg.mxu0
    %937 = vmatpush.msra.mxu0 %v582
    %938 = vmatpush.msra.mxu0 %v578
    %939 = vmatpush.msra.mxu0 %v574
    %940 = vmatpush.msra.mxu0 %v570
    %941 = vmatpush.msra.mxu0 %v566
    %942 = vmatpush.msra.mxu0 %v562
    %943 = vmatpush.msra.mxu0 %v558
    %944 = vmatpush.msra.mxu0 %v554
    %945 = vmatpush.msra.mxu0 %v550
    %946 = vmatpush.msra.mxu0 %v546
    %947 = vmatpush.msra.mxu0 %v542
    %948 = vmatpush.msra.mxu0 %v538
    %949 = vmatpush.msra.mxu0 %v534
    %950 = vmatpush.msra.mxu0 %v530
    %951 = vmatpush.msra.mxu0 %v526
    %952 = vmatpush.msra.mxu0 %v522
    %953 = vmatmul.f32.gmra.mxu0 %v389
    %v954 = vpop.f32.mrf.mxu0
    %v955 = vadd.f32 %v935, %v954
    %956 = vdwg.mxu0
    %957 = vmatpush.msra.mxu0 %v646
    %958 = vmatpush.msra.mxu0 %v642
    %959 = vmatpush.msra.mxu0 %v638
    %960 = vmatpush.msra.mxu0 %v634
    %961 = vmatpush.msra.mxu0 %v630
    %962 = vmatpush.msra.mxu0 %v626
    %963 = vmatpush.msra.mxu0 %v622
    %964 = vmatpush.msra.mxu0 %v618
    %965 = vmatpush.msra.mxu0 %v614
    %966 = vmatpush.msra.mxu0 %v610
    %967 = vmatpush.msra.mxu0 %v606
    %968 = vmatpush.msra.mxu0 %v602
    %969 = vmatpush.msra.mxu0 %v598
    %970 = vmatpush.msra.mxu0 %v594
    %971 = vmatpush.msra.mxu0 %v590
    %972 = vmatpush.msra.mxu0 %v586
    %973 = vmatmul.f32.gmra.mxu0 %v390
    %v974 = vpop.f32.mrf.mxu0
    %v975 = vadd.f32 %v955, %v974
    %976 = vdwg.mxu0
    %v977 = vld [vmem:[#allocation13] sm:$0xff]
    %v978 = vld [vmem:[#allocation13 + $0x8] sm:$0xff]
    %v979 = vld [vmem:[#allocation13 + $0x10] sm:$0xff]
    %v980 = vld [vmem:[#allocation13 + $0x18] sm:$0xff]
    %v981 = vld [vmem:[#allocation13 + $0x20] sm:$0xff]
    %v982 = vld [vmem:[#allocation13 + $0x28] sm:$0xff]
    %v983 = vld [vmem:[#allocation13 + $0x30] sm:$0xff]
    %v984 = vld [vmem:[#allocation13 + $0x38] sm:$0xff]
    %v985 = vld [vmem:[#allocation13 + $0x40] sm:$0xff]
    %v986 = vld [vmem:[#allocation13 + $0x48] sm:$0xff]
    %v987 = vld [vmem:[#allocation13 + $0x50] sm:$0xff]
    %v988 = vld [vmem:[#allocation13 + $0x58] sm:$0xff]
    %v989 = vld [vmem:[#allocation13 + $0x60] sm:$0xff]
    %v990 = vld [vmem:[#allocation13 + $0x68] sm:$0xff]
    %v991 = vld [vmem:[#allocation13 + $0x70] sm:$0xff]
    %v992 = vld [vmem:[#allocation13 + $0x78] sm:$0xff]
    %v993 = vld [vmem:[#allocation13 + $0x80] sm:$0xff]
    %v994 = vld [vmem:[#allocation13 + $0x88] sm:$0xff]
    %v995 = vld [vmem:[#allocation13 + $0x90] sm:$0xff]
    %v996 = vld [vmem:[#allocation13 + $0x98] sm:$0xff]
    %v997 = vld [vmem:[#allocation13 + $0xa0] sm:$0xff]
    %v998 = vld [vmem:[#allocation13 + $0xa8] sm:$0xff]
    %v999 = vld [vmem:[#allocation13 + $0xb0] sm:$0xff]
    %v1000 = vld [vmem:[#allocation13 + $0xb8] sm:$0xff]
    %v1001 = vld [vmem:[#allocation13 + $0xc0] sm:$0xff]
    %v1002 = vld [vmem:[#allocation13 + $0xc8] sm:$0xff]
    %v1003 = vld [vmem:[#allocation13 + $0xd0] sm:$0xff]
    %v1004 = vld [vmem:[#allocation13 + $0xd8] sm:$0xff]
    %v1005 = vld [vmem:[#allocation13 + $0xe0] sm:$0xff]
    %v1006 = vld [vmem:[#allocation13 + $0xe8] sm:$0xff]
    %v1007 = vld [vmem:[#allocation13 + $0xf0] sm:$0xff]
    %v1008 = vld [vmem:[#allocation13 + $0xf8] sm:$0xff]
    %v1009 = vld [vmem:[#allocation13 + $0x100] sm:$0xff]
    %v1010 = vld [vmem:[#allocation13 + $0x108] sm:$0xff]
    %v1011 = vld [vmem:[#allocation13 + $0x110] sm:$0xff]
    %v1012 = vld [vmem:[#allocation13 + $0x118] sm:$0xff]
    %v1013 = vld [vmem:[#allocation13 + $0x120] sm:$0xff]
    %v1014 = vld [vmem:[#allocation13 + $0x128] sm:$0xff]
    %v1015 = vld [vmem:[#allocation13 + $0x130] sm:$0xff]
    %v1016 = vld [vmem:[#allocation13 + $0x138] sm:$0xff]
    %v1017 = vld [vmem:[#allocation13 + $0x140] sm:$0xff]
    %v1018 = vld [vmem:[#allocation13 + $0x148] sm:$0xff]
    %v1019 = vld [vmem:[#allocation13 + $0x150] sm:$0xff]
    %v1020 = vld [vmem:[#allocation13 + $0x158] sm:$0xff]
    %v1021 = vld [vmem:[#allocation13 + $0x160] sm:$0xff]
    %v1022 = vld [vmem:[#allocation13 + $0x168] sm:$0xff]
    %v1023 = vld [vmem:[#allocation13 + $0x170] sm:$0xff]
    %v1024 = vld [vmem:[#allocation13 + $0x178] sm:$0xff]
    %v1025 = vld [vmem:[#allocation13 + $0x180] sm:$0xff]
    %v1026 = vld [vmem:[#allocation13 + $0x188] sm:$0xff]
    %v1027 = vld [vmem:[#allocation13 + $0x190] sm:$0xff]
    %v1028 = vld [vmem:[#allocation13 + $0x198] sm:$0xff]
    %v1029 = vld [vmem:[#allocation13 + $0x1a0] sm:$0xff]
    %v1030 = vld [vmem:[#allocation13 + $0x1a8] sm:$0xff]
    %v1031 = vld [vmem:[#allocation13 + $0x1b0] sm:$0xff]
    %v1032 = vld [vmem:[#allocation13 + $0x1b8] sm:$0xff]
    %v1033 = vld [vmem:[#allocation13 + $0x1c0] sm:$0xff]
    %v1034 = vld [vmem:[#allocation13 + $0x1c8] sm:$0xff]
    %v1035 = vld [vmem:[#allocation13 + $0x1d0] sm:$0xff]
    %v1036 = vld [vmem:[#allocation13 + $0x1d8] sm:$0xff]
    %v1037 = vld [vmem:[#allocation13 + $0x1e0] sm:$0xff]
    %v1038 = vld [vmem:[#allocation13 + $0x1e8] sm:$0xff]
    %v1039 = vld [vmem:[#allocation13 + $0x1f0] sm:$0xff]
    %v1040 = vld [vmem:[#allocation13 + $0x1f8] sm:$0xff]
    %v1041 = vld [vmem:[#allocation13 + $0x200] sm:$0xff]
    %v1042 = vld [vmem:[#allocation13 + $0x208] sm:$0xff]
    %v1043 = vld [vmem:[#allocation13 + $0x210] sm:$0xff]
    %v1044 = vld [vmem:[#allocation13 + $0x218] sm:$0xff]
    %v1045 = vld [vmem:[#allocation13 + $0x220] sm:$0xff]
    %v1046 = vld [vmem:[#allocation13 + $0x228] sm:$0xff]
    %v1047 = vld [vmem:[#allocation13 + $0x230] sm:$0xff]
    %v1048 = vld [vmem:[#allocation13 + $0x238] sm:$0xff]
    %v1049 = vld [vmem:[#allocation13 + $0x240] sm:$0xff]
    %v1050 = vld [vmem:[#allocation13 + $0x248] sm:$0xff]
    %v1051 = vld [vmem:[#allocation13 + $0x250] sm:$0xff]
    %v1052 = vld [vmem:[#allocation13 + $0x258] sm:$0xff]
    %v1053 = vld [vmem:[#allocation13 + $0x260] sm:$0xff]
    %v1054 = vld [vmem:[#allocation13 + $0x268] sm:$0xff]
    %v1055 = vld [vmem:[#allocation13 + $0x270] sm:$0xff]
    %v1056 = vld [vmem:[#allocation13 + $0x278] sm:$0xff]
    %v1057 = vld [vmem:[#allocation13 + $0x280] sm:$0xff]
    %v1058 = vld [vmem:[#allocation13 + $0x288] sm:$0xff]
    %v1059 = vld [vmem:[#allocation13 + $0x290] sm:$0xff]
    %v1060 = vld [vmem:[#allocation13 + $0x298] sm:$0xff]
    %v1061 = vld [vmem:[#allocation13 + $0x2a0] sm:$0xff]
    %v1062 = vld [vmem:[#allocation13 + $0x2a8] sm:$0xff]
    %v1063 = vld [vmem:[#allocation13 + $0x2b0] sm:$0xff]
    %v1064 = vld [vmem:[#allocation13 + $0x2b8] sm:$0xff]
    %v1065 = vld [vmem:[#allocation13 + $0x2c0] sm:$0xff]
    %v1066 = vld [vmem:[#allocation13 + $0x2c8] sm:$0xff]
    %v1067 = vld [vmem:[#allocation13 + $0x2d0] sm:$0xff]
    %v1068 = vld [vmem:[#allocation13 + $0x2d8] sm:$0xff]
    %v1069 = vld [vmem:[#allocation13 + $0x2e0] sm:$0xff]
    %v1070 = vld [vmem:[#allocation13 + $0x2e8] sm:$0xff]
    %v1071 = vld [vmem:[#allocation13 + $0x2f0] sm:$0xff]
    %v1072 = vld [vmem:[#allocation13 + $0x2f8] sm:$0xff]
    %v1073 = vld [vmem:[#allocation13 + $0x300] sm:$0xff]
    %v1074 = vld [vmem:[#allocation13 + $0x308] sm:$0xff]
    %v1075 = vld [vmem:[#allocation13 + $0x310] sm:$0xff]
    %v1076 = vld [vmem:[#allocation13 + $0x318] sm:$0xff]
    %v1077 = vld [vmem:[#allocation13 + $0x320] sm:$0xff]
    %v1078 = vld [vmem:[#allocation13 + $0x328] sm:$0xff]
    %v1079 = vld [vmem:[#allocation13 + $0x330] sm:$0xff]
    %v1080 = vld [vmem:[#allocation13 + $0x338] sm:$0xff]
    %v1081 = vld [vmem:[#allocation13 + $0x340] sm:$0xff]
    %v1082 = vld [vmem:[#allocation13 + $0x348] sm:$0xff]
    %v1083 = vld [vmem:[#allocation13 + $0x350] sm:$0xff]
    %v1084 = vld [vmem:[#allocation13 + $0x358] sm:$0xff]
    %v1085 = vld [vmem:[#allocation13 + $0x360] sm:$0xff]
    %v1086 = vld [vmem:[#allocation13 + $0x368] sm:$0xff]
    %v1087 = vld [vmem:[#allocation13 + $0x370] sm:$0xff]
    %v1088 = vld [vmem:[#allocation13 + $0x378] sm:$0xff]
    %v1089 = vld [vmem:[#allocation13 + $0x380] sm:$0xff]
    %v1090 = vld [vmem:[#allocation13 + $0x388] sm:$0xff]
    %v1091 = vld [vmem:[#allocation13 + $0x390] sm:$0xff]
    %v1092 = vld [vmem:[#allocation13 + $0x398] sm:$0xff]
    %v1093 = vld [vmem:[#allocation13 + $0x3a0] sm:$0xff]
    %v1094 = vld [vmem:[#allocation13 + $0x3a8] sm:$0xff]
    %v1095 = vld [vmem:[#allocation13 + $0x3b0] sm:$0xff]
    %v1096 = vld [vmem:[#allocation13 + $0x3b8] sm:$0xff]
    %v1097 = vld [vmem:[#allocation13 + $0x3c0] sm:$0xff]
    %v1098 = vld [vmem:[#allocation13 + $0x3c8] sm:$0xff]
    %v1099 = vld [vmem:[#allocation13 + $0x3d0] sm:$0xff]
    %v1100 = vld [vmem:[#allocation13 + $0x3d8] sm:$0xff]
    %v1101 = vld [vmem:[#allocation13 + $0x3e0] sm:$0xff]
    %v1102 = vld [vmem:[#allocation13 + $0x3e8] sm:$0xff]
    %v1103 = vld [vmem:[#allocation13 + $0x3f0] sm:$0xff]
    %v1104 = vld [vmem:[#allocation13 + $0x3f8] sm:$0xff]
    %v1105 = vld [vmem:[#allocation13 + $0x400] sm:$0xff]
    %v1106 = vld [vmem:[#allocation13 + $0x408] sm:$0xff]
    %v1107 = vld [vmem:[#allocation13 + $0x410] sm:$0xff]
    %v1108 = vld [vmem:[#allocation13 + $0x418] sm:$0xff]
    %v1109 = vld [vmem:[#allocation13 + $0x420] sm:$0xff]
    %v1110 = vld [vmem:[#allocation13 + $0x428] sm:$0xff]
    %v1111 = vld [vmem:[#allocation13 + $0x430] sm:$0xff]
    %v1112 = vld [vmem:[#allocation13 + $0x438] sm:$0xff]
    %v1113 = vld [vmem:[#allocation13 + $0x440] sm:$0xff]
    %v1114 = vld [vmem:[#allocation13 + $0x448] sm:$0xff]
    %v1115 = vld [vmem:[#allocation13 + $0x450] sm:$0xff]
    %v1116 = vld [vmem:[#allocation13 + $0x458] sm:$0xff]
    %v1117 = vld [vmem:[#allocation13 + $0x460] sm:$0xff]
    %v1118 = vld [vmem:[#allocation13 + $0x468] sm:$0xff]
    %v1119 = vld [vmem:[#allocation13 + $0x470] sm:$0xff]
    %v1120 = vld [vmem:[#allocation13 + $0x478] sm:$0xff]
    %v1121 = vld [vmem:[#allocation13 + $0x480] sm:$0xff]
    %v1122 = vld [vmem:[#allocation13 + $0x488] sm:$0xff]
    %v1123 = vld [vmem:[#allocation13 + $0x490] sm:$0xff]
    %v1124 = vld [vmem:[#allocation13 + $0x498] sm:$0xff]
    %v1125 = vld [vmem:[#allocation13 + $0x4a0] sm:$0xff]
    %v1126 = vld [vmem:[#allocation13 + $0x4a8] sm:$0xff]
    %v1127 = vld [vmem:[#allocation13 + $0x4b0] sm:$0xff]
    %v1128 = vld [vmem:[#allocation13 + $0x4b8] sm:$0xff]
    %v1129 = vld [vmem:[#allocation13 + $0x4c0] sm:$0xff]
    %v1130 = vld [vmem:[#allocation13 + $0x4c8] sm:$0xff]
    %v1131 = vld [vmem:[#allocation13 + $0x4d0] sm:$0xff]
    %v1132 = vld [vmem:[#allocation13 + $0x4d8] sm:$0xff]
    %v1133 = vld [vmem:[#allocation13 + $0x4e0] sm:$0xff]
    %v1134 = vld [vmem:[#allocation13 + $0x4e8] sm:$0xff]
    %v1135 = vld [vmem:[#allocation13 + $0x4f0] sm:$0xff]
    %v1136 = vld [vmem:[#allocation13 + $0x4f8] sm:$0xff]
    %v1137 = vld [vmem:[#allocation13 + $0x500] sm:$0xff]
    %v1138 = vld [vmem:[#allocation13 + $0x508] sm:$0xff]
    %v1139 = vld [vmem:[#allocation13 + $0x510] sm:$0xff]
    %v1140 = vld [vmem:[#allocation13 + $0x518] sm:$0xff]
    %v1141 = vld [vmem:[#allocation13 + $0x520] sm:$0xff]
    %v1142 = vld [vmem:[#allocation13 + $0x528] sm:$0xff]
    %v1143 = vld [vmem:[#allocation13 + $0x530] sm:$0xff]
    %v1144 = vld [vmem:[#allocation13 + $0x538] sm:$0xff]
    %v1145 = vld [vmem:[#allocation13 + $0x540] sm:$0xff]
    %v1146 = vld [vmem:[#allocation13 + $0x548] sm:$0xff]
    %v1147 = vld [vmem:[#allocation13 + $0x550] sm:$0xff]
    %v1148 = vld [vmem:[#allocation13 + $0x558] sm:$0xff]
    %v1149 = vld [vmem:[#allocation13 + $0x560] sm:$0xff]
    %v1150 = vld [vmem:[#allocation13 + $0x568] sm:$0xff]
    %v1151 = vld [vmem:[#allocation13 + $0x570] sm:$0xff]
    %v1152 = vld [vmem:[#allocation13 + $0x578] sm:$0xff]
    %v1153 = vld [vmem:[#allocation13 + $0x580] sm:$0xff]
    %v1154 = vld [vmem:[#allocation13 + $0x588] sm:$0xff]
    %v1155 = vld [vmem:[#allocation13 + $0x590] sm:$0xff]
    %v1156 = vld [vmem:[#allocation13 + $0x598] sm:$0xff]
    %v1157 = vld [vmem:[#allocation13 + $0x5a0] sm:$0xff]
    %v1158 = vld [vmem:[#allocation13 + $0x5a8] sm:$0xff]
    %v1159 = vld [vmem:[#allocation13 + $0x5b0] sm:$0xff]
    %v1160 = vld [vmem:[#allocation13 + $0x5b8] sm:$0xff]
    %v1161 = vld [vmem:[#allocation13 + $0x5c0] sm:$0xff]
    %v1162 = vld [vmem:[#allocation13 + $0x5c8] sm:$0xff]
    %v1163 = vld [vmem:[#allocation13 + $0x5d0] sm:$0xff]
    %v1164 = vld [vmem:[#allocation13 + $0x5d8] sm:$0xff]
    %v1165 = vld [vmem:[#allocation13 + $0x5e0] sm:$0xff]
    %v1166 = vld [vmem:[#allocation13 + $0x5e8] sm:$0xff]
    %v1167 = vld [vmem:[#allocation13 + $0x5f0] sm:$0xff]
    %v1168 = vld [vmem:[#allocation13 + $0x5f8] sm:$0xff]
    %v1169 = vld [vmem:[#allocation13 + $0x600] sm:$0xff]
    %v1170 = vld [vmem:[#allocation13 + $0x608] sm:$0xff]
    %v1171 = vld [vmem:[#allocation13 + $0x610] sm:$0xff]
    %v1172 = vld [vmem:[#allocation13 + $0x618] sm:$0xff]
    %v1173 = vld [vmem:[#allocation13 + $0x620] sm:$0xff]
    %v1174 = vld [vmem:[#allocation13 + $0x628] sm:$0xff]
    %v1175 = vld [vmem:[#allocation13 + $0x630] sm:$0xff]
    %v1176 = vld [vmem:[#allocation13 + $0x638] sm:$0xff]
    %v1177 = vld [vmem:[#allocation13 + $0x640] sm:$0xff]
    %v1178 = vld [vmem:[#allocation13 + $0x648] sm:$0xff]
    %v1179 = vld [vmem:[#allocation13 + $0x650] sm:$0xff]
    %v1180 = vld [vmem:[#allocation13 + $0x658] sm:$0xff]
    %v1181 = vld [vmem:[#allocation13 + $0x660] sm:$0xff]
    %v1182 = vld [vmem:[#allocation13 + $0x668] sm:$0xff]
    %v1183 = vld [vmem:[#allocation13 + $0x670] sm:$0xff]
    %v1184 = vld [vmem:[#allocation13 + $0x678] sm:$0xff]
    %v1185 = vld [vmem:[#allocation13 + $0x680] sm:$0xff]
    %v1186 = vld [vmem:[#allocation13 + $0x688] sm:$0xff]
    %v1187 = vld [vmem:[#allocation13 + $0x690] sm:$0xff]
    %v1188 = vld [vmem:[#allocation13 + $0x698] sm:$0xff]
    %v1189 = vld [vmem:[#allocation13 + $0x6a0] sm:$0xff]
    %v1190 = vld [vmem:[#allocation13 + $0x6a8] sm:$0xff]
    %v1191 = vld [vmem:[#allocation13 + $0x6b0] sm:$0xff]
    %v1192 = vld [vmem:[#allocation13 + $0x6b8] sm:$0xff]
    %v1193 = vld [vmem:[#allocation13 + $0x6c0] sm:$0xff]
    %v1194 = vld [vmem:[#allocation13 + $0x6c8] sm:$0xff]
    %v1195 = vld [vmem:[#allocation13 + $0x6d0] sm:$0xff]
    %v1196 = vld [vmem:[#allocation13 + $0x6d8] sm:$0xff]
    %v1197 = vld [vmem:[#allocation13 + $0x6e0] sm:$0xff]
    %v1198 = vld [vmem:[#allocation13 + $0x6e8] sm:$0xff]
    %v1199 = vld [vmem:[#allocation13 + $0x6f0] sm:$0xff]
    %v1200 = vld [vmem:[#allocation13 + $0x6f8] sm:$0xff]
    %v1201 = vld [vmem:[#allocation13 + $0x700] sm:$0xff]
    %v1202 = vld [vmem:[#allocation13 + $0x708] sm:$0xff]
    %v1203 = vld [vmem:[#allocation13 + $0x710] sm:$0xff]
    %v1204 = vld [vmem:[#allocation13 + $0x718] sm:$0xff]
    %v1205 = vld [vmem:[#allocation13 + $0x720] sm:$0xff]
    %v1206 = vld [vmem:[#allocation13 + $0x728] sm:$0xff]
    %v1207 = vld [vmem:[#allocation13 + $0x730] sm:$0xff]
    %v1208 = vld [vmem:[#allocation13 + $0x738] sm:$0xff]
    %v1209 = vld [vmem:[#allocation13 + $0x740] sm:$0xff]
    %v1210 = vld [vmem:[#allocation13 + $0x748] sm:$0xff]
    %v1211 = vld [vmem:[#allocation13 + $0x750] sm:$0xff]
    %v1212 = vld [vmem:[#allocation13 + $0x758] sm:$0xff]
    %v1213 = vld [vmem:[#allocation13 + $0x760] sm:$0xff]
    %v1214 = vld [vmem:[#allocation13 + $0x768] sm:$0xff]
    %v1215 = vld [vmem:[#allocation13 + $0x770] sm:$0xff]
    %v1216 = vld [vmem:[#allocation13 + $0x778] sm:$0xff]
    %v1217 = vld [vmem:[#allocation13 + $0x780] sm:$0xff]
    %v1218 = vld [vmem:[#allocation13 + $0x788] sm:$0xff]
    %v1219 = vld [vmem:[#allocation13 + $0x790] sm:$0xff]
    %v1220 = vld [vmem:[#allocation13 + $0x798] sm:$0xff]
    %v1221 = vld [vmem:[#allocation13 + $0x7a0] sm:$0xff]
    %v1222 = vld [vmem:[#allocation13 + $0x7a8] sm:$0xff]
    %v1223 = vld [vmem:[#allocation13 + $0x7b0] sm:$0xff]
    %v1224 = vld [vmem:[#allocation13 + $0x7b8] sm:$0xff]
    %v1225 = vld [vmem:[#allocation13 + $0x7c0] sm:$0xff]
    %v1226 = vld [vmem:[#allocation13 + $0x7c8] sm:$0xff]
    %v1227 = vld [vmem:[#allocation13 + $0x7d0] sm:$0xff]
    %v1228 = vld [vmem:[#allocation13 + $0x7d8] sm:$0xff]
    %v1229 = vld [vmem:[#allocation13 + $0x7e0] sm:$0xff]
    %v1230 = vld [vmem:[#allocation13 + $0x7e8] sm:$0xff]
    %v1231 = vld [vmem:[#allocation13 + $0x7f0] sm:$0xff]
    %v1232 = vld [vmem:[#allocation13 + $0x7f8] sm:$0xff]
    %1233 = vmatpush.msra.mxu0 %v1037
    %1234 = vmatpush.msra.mxu0 %v1033
    %1235 = vmatpush.msra.mxu0 %v1029
    %1236 = vmatpush.msra.mxu0 %v1025
    %1237 = vmatpush.msra.mxu0 %v1021
    %1238 = vmatpush.msra.mxu0 %v1017
    %1239 = vmatpush.msra.mxu0 %v1013
    %1240 = vmatpush.msra.mxu0 %v1009
    %1241 = vmatpush.msra.mxu0 %v1005
    %1242 = vmatpush.msra.mxu0 %v1001
    %1243 = vmatpush.msra.mxu0 %v997
    %1244 = vmatpush.msra.mxu0 %v993
    %1245 = vmatpush.msra.mxu0 %v989
    %1246 = vmatpush.msra.mxu0 %v985
    %1247 = vmatpush.msra.mxu0 %v981
    %1248 = vmatpush.msra.mxu0 %v977
    %1249 = vmatmul.f32.gmra.mxu0 %v735
    %v1250 = vpop.f32.mrf.mxu0
    %v1251 = vadd.f32 0.0, %v1250
    %1252 = vdwg.mxu0
    %1253 = vmatpush.msra.mxu0 %v1101
    %1254 = vmatpush.msra.mxu0 %v1097
    %1255 = vmatpush.msra.mxu0 %v1093
    %1256 = vmatpush.msra.mxu0 %v1089
    %1257 = vmatpush.msra.mxu0 %v1085
    %1258 = vmatpush.msra.mxu0 %v1081
    %1259 = vmatpush.msra.mxu0 %v1077
    %1260 = vmatpush.msra.mxu0 %v1073
    %1261 = vmatpush.msra.mxu0 %v1069
    %1262 = vmatpush.msra.mxu0 %v1065
    %1263 = vmatpush.msra.mxu0 %v1061
    %1264 = vmatpush.msra.mxu0 %v1057
    %1265 = vmatpush.msra.mxu0 %v1053
    %1266 = vmatpush.msra.mxu0 %v1049
    %1267 = vmatpush.msra.mxu0 %v1045
    %1268 = vmatpush.msra.mxu0 %v1041
    %1269 = vmatmul.f32.gmra.mxu0 %v815
    %v1270 = vpop.f32.mrf.mxu0
    %v1271 = vadd.f32 %v1251, %v1270
    %1272 = vdwg.mxu0
    %1273 = vmatpush.msra.mxu0 %v1165
    %1274 = vmatpush.msra.mxu0 %v1161
    %1275 = vmatpush.msra.mxu0 %v1157
    %1276 = vmatpush.msra.mxu0 %v1153
    %1277 = vmatpush.msra.mxu0 %v1149
    %1278 = vmatpush.msra.mxu0 %v1145
    %1279 = vmatpush.msra.mxu0 %v1141
    %1280 = vmatpush.msra.mxu0 %v1137
    %1281 = vmatpush.msra.mxu0 %v1133
    %1282 = vmatpush.msra.mxu0 %v1129
    %1283 = vmatpush.msra.mxu0 %v1125
    %1284 = vmatpush.msra.mxu0 %v1121
    %1285 = vmatpush.msra.mxu0 %v1117
    %1286 = vmatpush.msra.mxu0 %v1113
    %1287 = vmatpush.msra.mxu0 %v1109
    %1288 = vmatpush.msra.mxu0 %v1105
    %1289 = vmatmul.f32.gmra.mxu0 %v895
    %v1290 = vpop.f32.mrf.mxu0
    %v1291 = vadd.f32 %v1271, %v1290
    %1292 = vdwg.mxu0
    %1293 = vmatpush.msra.mxu0 %v1229
    %1294 = vmatpush.msra.mxu0 %v1225
    %1295 = vmatpush.msra.mxu0 %v1221
    %1296 = vmatpush.msra.mxu0 %v1217
    %1297 = vmatpush.msra.mxu0 %v1213
    %1298 = vmatpush.msra.mxu0 %v1209
    %1299 = vmatpush.msra.mxu0 %v1205
    %1300 = vmatpush.msra.mxu0 %v1201
    %1301 = vmatpush.msra.mxu0 %v1197
    %1302 = vmatpush.msra.mxu0 %v1193
    %1303 = vmatpush.msra.mxu0 %v1189
    %1304 = vmatpush.msra.mxu0 %v1185
    %1305 = vmatpush.msra.mxu0 %v1181
    %1306 = vmatpush.msra.mxu0 %v1177
    %1307 = vmatpush.msra.mxu0 %v1173
    %1308 = vmatpush.msra.mxu0 %v1169
    %1309 = vmatmul.f32.gmra.mxu0 %v975
    %v1310 = vpop.f32.mrf.mxu0
    %v1311 = vadd.f32 %v1291, %v1310
    %1312 = vdwg.mxu0
    %1313 = vmatpush.msra.mxu0 %v1038
    %1314 = vmatpush.msra.mxu0 %v1034
    %1315 = vmatpush.msra.mxu0 %v1030
    %1316 = vmatpush.msra.mxu0 %v1026
    %1317 = vmatpush.msra.mxu0 %v1022
    %1318 = vmatpush.msra.mxu0 %v1018
    %1319 = vmatpush.msra.mxu0 %v1014
    %1320 = vmatpush.msra.mxu0 %v1010
    %1321 = vmatpush.msra.mxu0 %v1006
    %1322 = vmatpush.msra.mxu0 %v1002
    %1323 = vmatpush.msra.mxu0 %v998
    %1324 = vmatpush.msra.mxu0 %v994
    %1325 = vmatpush.msra.mxu0 %v990
    %1326 = vmatpush.msra.mxu0 %v986
    %1327 = vmatpush.msra.mxu0 %v982
    %1328 = vmatpush.msra.mxu0 %v978
    %1329 = vmatmul.f32.gmra.mxu0 %v735
    %v1330 = vpop.f32.mrf.mxu0
    %v1331 = vadd.f32 0.0, %v1330
    %1332 = vdwg.mxu0
    %1333 = vmatpush.msra.mxu0 %v1102
    %1334 = vmatpush.msra.mxu0 %v1098
    %1335 = vmatpush.msra.mxu0 %v1094
    %1336 = vmatpush.msra.mxu0 %v1090
    %1337 = vmatpush.msra.mxu0 %v1086
    %1338 = vmatpush.msra.mxu0 %v1082
    %1339 = vmatpush.msra.mxu0 %v1078
    %1340 = vmatpush.msra.mxu0 %v1074
    %1341 = vmatpush.msra.mxu0 %v1070
    %1342 = vmatpush.msra.mxu0 %v1066
    %1343 = vmatpush.msra.mxu0 %v1062
    %1344 = vmatpush.msra.mxu0 %v1058
    %1345 = vmatpush.msra.mxu0 %v1054
    %1346 = vmatpush.msra.mxu0 %v1050
    %1347 = vmatpush.msra.mxu0 %v1046
    %1348 = vmatpush.msra.mxu0 %v1042
    %1349 = vmatmul.f32.gmra.mxu0 %v815
    %v1350 = vpop.f32.mrf.mxu0
    %v1351 = vadd.f32 %v1331, %v1350
    %1352 = vdwg.mxu0
    %1353 = vmatpush.msra.mxu0 %v1166
    %1354 = vmatpush.msra.mxu0 %v1162
    %1355 = vmatpush.msra.mxu0 %v1158
    %1356 = vmatpush.msra.mxu0 %v1154
    %1357 = vmatpush.msra.mxu0 %v1150
    %1358 = vmatpush.msra.mxu0 %v1146
    %1359 = vmatpush.msra.mxu0 %v1142
    %1360 = vmatpush.msra.mxu0 %v1138
    %1361 = vmatpush.msra.mxu0 %v1134
    %1362 = vmatpush.msra.mxu0 %v1130
    %1363 = vmatpush.msra.mxu0 %v1126
    %1364 = vmatpush.msra.mxu0 %v1122
    %1365 = vmatpush.msra.mxu0 %v1118
    %1366 = vmatpush.msra.mxu0 %v1114
    %1367 = vmatpush.msra.mxu0 %v1110
    %1368 = vmatpush.msra.mxu0 %v1106
    %1369 = vmatmul.f32.gmra.mxu0 %v895
    %v1370 = vpop.f32.mrf.mxu0
    %v1371 = vadd.f32 %v1351, %v1370
    %1372 = vdwg.mxu0
    %1373 = vmatpush.msra.mxu0 %v1230
    %1374 = vmatpush.msra.mxu0 %v1226
    %1375 = vmatpush.msra.mxu0 %v1222
    %1376 = vmatpush.msra.mxu0 %v1218
    %1377 = vmatpush.msra.mxu0 %v1214
    %1378 = vmatpush.msra.mxu0 %v1210
    %1379 = vmatpush.msra.mxu0 %v1206
    %1380 = vmatpush.msra.mxu0 %v1202
    %1381 = vmatpush.msra.mxu0 %v1198
    %1382 = vmatpush.msra.mxu0 %v1194
    %1383 = vmatpush.msra.mxu0 %v1190
    %1384 = vmatpush.msra.mxu0 %v1186
    %1385 = vmatpush.msra.mxu0 %v1182
    %1386 = vmatpush.msra.mxu0 %v1178
    %1387 = vmatpush.msra.mxu0 %v1174
    %1388 = vmatpush.msra.mxu0 %v1170
    %1389 = vmatmul.f32.gmra.mxu0 %v975
    %v1390 = vpop.f32.mrf.mxu0
    %v1391 = vadd.f32 %v1371, %v1390
    %1392 = vdwg.mxu0
    %1393 = vmatpush.msra.mxu0 %v1039
    %1394 = vmatpush.msra.mxu0 %v1035
    %1395 = vmatpush.msra.mxu0 %v1031
    %1396 = vmatpush.msra.mxu0 %v1027
    %1397 = vmatpush.msra.mxu0 %v1023
    %1398 = vmatpush.msra.mxu0 %v1019
    %1399 = vmatpush.msra.mxu0 %v1015
    %1400 = vmatpush.msra.mxu0 %v1011
    %1401 = vmatpush.msra.mxu0 %v1007
    %1402 = vmatpush.msra.mxu0 %v1003
    %1403 = vmatpush.msra.mxu0 %v999
    %1404 = vmatpush.msra.mxu0 %v995
    %1405 = vmatpush.msra.mxu0 %v991
    %1406 = vmatpush.msra.mxu0 %v987
    %1407 = vmatpush.msra.mxu0 %v983
    %1408 = vmatpush.msra.mxu0 %v979
    %1409 = vmatmul.f32.gmra.mxu0 %v735
    %v1410 = vpop.f32.mrf.mxu0
    %v1411 = vadd.f32 0.0, %v1410
    %1412 = vdwg.mxu0
    %1413 = vmatpush.msra.mxu0 %v1103
    %1414 = vmatpush.msra.mxu0 %v1099
    %1415 = vmatpush.msra.mxu0 %v1095
    %1416 = vmatpush.msra.mxu0 %v1091
    %1417 = vmatpush.msra.mxu0 %v1087
    %1418 = vmatpush.msra.mxu0 %v1083
    %1419 = vmatpush.msra.mxu0 %v1079
    %1420 = vmatpush.msra.mxu0 %v1075
    %1421 = vmatpush.msra.mxu0 %v1071
    %1422 = vmatpush.msra.mxu0 %v1067
    %1423 = vmatpush.msra.mxu0 %v1063
    %1424 = vmatpush.msra.mxu0 %v1059
    %1425 = vmatpush.msra.mxu0 %v1055
    %1426 = vmatpush.msra.mxu0 %v1051
    %1427 = vmatpush.msra.mxu0 %v1047
    %1428 = vmatpush.msra.mxu0 %v1043
    %1429 = vmatmul.f32.gmra.mxu0 %v815
    %v1430 = vpop.f32.mrf.mxu0
    %v1431 = vadd.f32 %v1411, %v1430
    %1432 = vdwg.mxu0
    %1433 = vmatpush.msra.mxu0 %v1167
    %1434 = vmatpush.msra.mxu0 %v1163
    %1435 = vmatpush.msra.mxu0 %v1159
    %1436 = vmatpush.msra.mxu0 %v1155
    %1437 = vmatpush.msra.mxu0 %v1151
    %1438 = vmatpush.msra.mxu0 %v1147
    %1439 = vmatpush.msra.mxu0 %v1143
    %1440 = vmatpush.msra.mxu0 %v1139
    %1441 = vmatpush.msra.mxu0 %v1135
    %1442 = vmatpush.msra.mxu0 %v1131
    %1443 = vmatpush.msra.mxu0 %v1127
    %1444 = vmatpush.msra.mxu0 %v1123
    %1445 = vmatpush.msra.mxu0 %v1119
    %1446 = vmatpush.msra.mxu0 %v1115
    %1447 = vmatpush.msra.mxu0 %v1111
    %1448 = vmatpush.msra.mxu0 %v1107
    %1449 = vmatmul.f32.gmra.mxu0 %v895
    %v1450 = vpop.f32.mrf.mxu0
    %v1451 = vadd.f32 %v1431, %v1450
    %1452 = vdwg.mxu0
    %1453 = vmatpush.msra.mxu0 %v1231
    %1454 = vmatpush.msra.mxu0 %v1227
    %1455 = vmatpush.msra.mxu0 %v1223
    %1456 = vmatpush.msra.mxu0 %v1219
    %1457 = vmatpush.msra.mxu0 %v1215
    %1458 = vmatpush.msra.mxu0 %v1211
    %1459 = vmatpush.msra.mxu0 %v1207
    %1460 = vmatpush.msra.mxu0 %v1203
    %1461 = vmatpush.msra.mxu0 %v1199
    %1462 = vmatpush.msra.mxu0 %v1195
    %1463 = vmatpush.msra.mxu0 %v1191
    %1464 = vmatpush.msra.mxu0 %v1187
    %1465 = vmatpush.msra.mxu0 %v1183
    %1466 = vmatpush.msra.mxu0 %v1179
    %1467 = vmatpush.msra.mxu0 %v1175
    %1468 = vmatpush.msra.mxu0 %v1171
    %1469 = vmatmul.f32.gmra.mxu0 %v975
    %v1470 = vpop.f32.mrf.mxu0
    %v1471 = vadd.f32 %v1451, %v1470
    %1472 = vdwg.mxu0
    %1473 = vmatpush.msra.mxu0 %v1040
    %1474 = vmatpush.msra.mxu0 %v1036
    %1475 = vmatpush.msra.mxu0 %v1032
    %1476 = vmatpush.msra.mxu0 %v1028
    %1477 = vmatpush.msra.mxu0 %v1024
    %1478 = vmatpush.msra.mxu0 %v1020
    %1479 = vmatpush.msra.mxu0 %v1016
    %1480 = vmatpush.msra.mxu0 %v1012
    %1481 = vmatpush.msra.mxu0 %v1008
    %1482 = vmatpush.msra.mxu0 %v1004
    %1483 = vmatpush.msra.mxu0 %v1000
    %1484 = vmatpush.msra.mxu0 %v996
    %1485 = vmatpush.msra.mxu0 %v992
    %1486 = vmatpush.msra.mxu0 %v988
    %1487 = vmatpush.msra.mxu0 %v984
    %1488 = vmatpush.msra.mxu0 %v980
    %1489 = vmatmul.f32.gmra.mxu0 %v735
    %v1490 = vpop.f32.mrf.mxu0
    %v1491 = vadd.f32 0.0, %v1490
    %1492 = vdwg.mxu0
    %1493 = vmatpush.msra.mxu0 %v1104
    %1494 = vmatpush.msra.mxu0 %v1100
    %1495 = vmatpush.msra.mxu0 %v1096
    %1496 = vmatpush.msra.mxu0 %v1092
    %1497 = vmatpush.msra.mxu0 %v1088
    %1498 = vmatpush.msra.mxu0 %v1084
    %1499 = vmatpush.msra.mxu0 %v1080
    %1500 = vmatpush.msra.mxu0 %v1076
    %1501 = vmatpush.msra.mxu0 %v1072
    %1502 = vmatpush.msra.mxu0 %v1068
    %1503 = vmatpush.msra.mxu0 %v1064
    %1504 = vmatpush.msra.mxu0 %v1060
    %1505 = vmatpush.msra.mxu0 %v1056
    %1506 = vmatpush.msra.mxu0 %v1052
    %1507 = vmatpush.msra.mxu0 %v1048
    %1508 = vmatpush.msra.mxu0 %v1044
    %1509 = vmatmul.f32.gmra.mxu0 %v815
    %v1510 = vpop.f32.mrf.mxu0
    %v1511 = vadd.f32 %v1491, %v1510
    %1512 = vdwg.mxu0
    %1513 = vmatpush.msra.mxu0 %v1168
    %1514 = vmatpush.msra.mxu0 %v1164
    %1515 = vmatpush.msra.mxu0 %v1160
    %1516 = vmatpush.msra.mxu0 %v1156
    %1517 = vmatpush.msra.mxu0 %v1152
    %1518 = vmatpush.msra.mxu0 %v1148
    %1519 = vmatpush.msra.mxu0 %v1144
    %1520 = vmatpush.msra.mxu0 %v1140
    %1521 = vmatpush.msra.mxu0 %v1136
    %1522 = vmatpush.msra.mxu0 %v1132
    %1523 = vmatpush.msra.mxu0 %v1128
    %1524 = vmatpush.msra.mxu0 %v1124
    %1525 = vmatpush.msra.mxu0 %v1120
    %1526 = vmatpush.msra.mxu0 %v1116
    %1527 = vmatpush.msra.mxu0 %v1112
    %1528 = vmatpush.msra.mxu0 %v1108
    %1529 = vmatmul.f32.gmra.mxu0 %v895
    %v1530 = vpop.f32.mrf.mxu0
    %v1531 = vadd.f32 %v1511, %v1530
    %1532 = vdwg.mxu0
    %1533 = vmatpush.msra.mxu0 %v1232
    %1534 = vmatpush.msra.mxu0 %v1228
    %1535 = vmatpush.msra.mxu0 %v1224
    %1536 = vmatpush.msra.mxu0 %v1220
    %1537 = vmatpush.msra.mxu0 %v1216
    %1538 = vmatpush.msra.mxu0 %v1212
    %1539 = vmatpush.msra.mxu0 %v1208
    %1540 = vmatpush.msra.mxu0 %v1204
    %1541 = vmatpush.msra.mxu0 %v1200
    %1542 = vmatpush.msra.mxu0 %v1196
    %1543 = vmatpush.msra.mxu0 %v1192
    %1544 = vmatpush.msra.mxu0 %v1188
    %1545 = vmatpush.msra.mxu0 %v1184
    %1546 = vmatpush.msra.mxu0 %v1180
    %1547 = vmatpush.msra.mxu0 %v1176
    %1548 = vmatpush.msra.mxu0 %v1172
    %1549 = vmatmul.f32.gmra.mxu0 %v975
    %v1550 = vpop.f32.mrf.mxu0
    %v1551 = vadd.f32 %v1531, %v1550
    %1552 = vdwg.mxu0
    %v1553 = vsub.f32 %v735, %v1311
    %v1554 = vsub.f32 %v815, %v1391
    %v1555 = vsub.f32 %v895, %v1471
    %v1556 = vsub.f32 %v975, %v1551
    %v1557 = vmul.f32 %v1553, %v1553
    %v1558 = vmul.f32 %v1554, %v1554
    %v1559 = vmul.f32 %v1555, %v1555
    %v1560 = vmul.f32 %v1556, %v1556
    %1561 = vmatpush.msra.mxu0 %v1037
    %1562 = vmatpush.msra.mxu0 %v1033
    %1563 = vmatpush.msra.mxu0 %v1029
    %1564 = vmatpush.msra.mxu0 %v1025
    %1565 = vmatpush.msra.mxu0 %v1021
    %1566 = vmatpush.msra.mxu0 %v1017
    %1567 = vmatpush.msra.mxu0 %v1013
    %1568 = vmatpush.msra.mxu0 %v1009
    %1569 = vmatpush.msra.mxu0 %v1005
    %1570 = vmatpush.msra.mxu0 %v1001
    %1571 = vmatpush.msra.mxu0 %v997
    %1572 = vmatpush.msra.mxu0 %v993
    %1573 = vmatpush.msra.mxu0 %v989
    %1574 = vmatpush.msra.mxu0 %v985
    %1575 = vmatpush.msra.mxu0 %v981
    %1576 = vmatpush.msra.mxu0 %v977
    %1577 = vmatmul.f32.gmra.mxu0 %v1557
    %v1578 = vpop.f32.mrf.mxu0
    %v1579 = vadd.f32 1e-05, %v1578
    %1580 = vdwg.mxu0
    %1581 = vmatpush.msra.mxu0 %v1101
    %1582 = vmatpush.msra.mxu0 %v1097
    %1583 = vmatpush.msra.mxu0 %v1093
    %1584 = vmatpush.msra.mxu0 %v1089
    %1585 = vmatpush.msra.mxu0 %v1085
    %1586 = vmatpush.msra.mxu0 %v1081
    %1587 = vmatpush.msra.mxu0 %v1077
    %1588 = vmatpush.msra.mxu0 %v1073
    %1589 = vmatpush.msra.mxu0 %v1069
    %1590 = vmatpush.msra.mxu0 %v1065
    %1591 = vmatpush.msra.mxu0 %v1061
    %1592 = vmatpush.msra.mxu0 %v1057
    %1593 = vmatpush.msra.mxu0 %v1053
    %1594 = vmatpush.msra.mxu0 %v1049
    %1595 = vmatpush.msra.mxu0 %v1045
    %1596 = vmatpush.msra.mxu0 %v1041
    %1597 = vmatmul.f32.gmra.mxu0 %v1558
    %v1598 = vpop.f32.mrf.mxu0
    %v1599 = vadd.f32 %v1579, %v1598
    %1600 = vdwg.mxu0
    %1601 = vmatpush.msra.mxu0 %v1165
    %1602 = vmatpush.msra.mxu0 %v1161
    %1603 = vmatpush.msra.mxu0 %v1157
    %1604 = vmatpush.msra.mxu0 %v1153
    %1605 = vmatpush.msra.mxu0 %v1149
    %1606 = vmatpush.msra.mxu0 %v1145
    %1607 = vmatpush.msra.mxu0 %v1141
    %1608 = vmatpush.msra.mxu0 %v1137
    %1609 = vmatpush.msra.mxu0 %v1133
    %1610 = vmatpush.msra.mxu0 %v1129
    %1611 = vmatpush.msra.mxu0 %v1125
    %1612 = vmatpush.msra.mxu0 %v1121
    %1613 = vmatpush.msra.mxu0 %v1117
    %1614 = vmatpush.msra.mxu0 %v1113
    %1615 = vmatpush.msra.mxu0 %v1109
    %1616 = vmatpush.msra.mxu0 %v1105
    %1617 = vmatmul.f32.gmra.mxu0 %v1559
    %v1618 = vpop.f32.mrf.mxu0
    %v1619 = vadd.f32 %v1599, %v1618
    %1620 = vdwg.mxu0
    %1621 = vmatpush.msra.mxu0 %v1229
    %1622 = vmatpush.msra.mxu0 %v1225
    %1623 = vmatpush.msra.mxu0 %v1221
    %1624 = vmatpush.msra.mxu0 %v1217
    %1625 = vmatpush.msra.mxu0 %v1213
    %1626 = vmatpush.msra.mxu0 %v1209
    %1627 = vmatpush.msra.mxu0 %v1205
    %1628 = vmatpush.msra.mxu0 %v1201
    %1629 = vmatpush.msra.mxu0 %v1197
    %1630 = vmatpush.msra.mxu0 %v1193
    %1631 = vmatpush.msra.mxu0 %v1189
    %1632 = vmatpush.msra.mxu0 %v1185
    %1633 = vmatpush.msra.mxu0 %v1181
    %1634 = vmatpush.msra.mxu0 %v1177
    %1635 = vmatpush.msra.mxu0 %v1173
    %1636 = vmatpush.msra.mxu0 %v1169
    %1637 = vmatmul.f32.gmra.mxu0 %v1560
    %v1638 = vpop.f32.mrf.mxu0
    %v1639 = vadd.f32 %v1619, %v1638
    %1640 = vdwg.mxu0
    %1641 = vmatpush.msra.mxu0 %v1038
    %1642 = vmatpush.msra.mxu0 %v1034
    %1643 = vmatpush.msra.mxu0 %v1030
    %1644 = vmatpush.msra.mxu0 %v1026
    %1645 = vmatpush.msra.mxu0 %v1022
    %1646 = vmatpush.msra.mxu0 %v1018
    %1647 = vmatpush.msra.mxu0 %v1014
    %1648 = vmatpush.msra.mxu0 %v1010
    %1649 = vmatpush.msra.mxu0 %v1006
    %1650 = vmatpush.msra.mxu0 %v1002
    %1651 = vmatpush.msra.mxu0 %v998
    %1652 = vmatpush.msra.mxu0 %v994
    %1653 = vmatpush.msra.mxu0 %v990
    %1654 = vmatpush.msra.mxu0 %v986
    %1655 = vmatpush.msra.mxu0 %v982
    %1656 = vmatpush.msra.mxu0 %v978
    %1657 = vmatmul.f32.gmra.mxu0 %v1557
    %v1658 = vpop.f32.mrf.mxu0
    %v1659 = vadd.f32 1e-05, %v1658
    %1660 = vdwg.mxu0
    %1661 = vmatpush.msra.mxu0 %v1102
    %1662 = vmatpush.msra.mxu0 %v1098
    %1663 = vmatpush.msra.mxu0 %v1094
    %1664 = vmatpush.msra.mxu0 %v1090
    %1665 = vmatpush.msra.mxu0 %v1086
    %1666 = vmatpush.msra.mxu0 %v1082
    %1667 = vmatpush.msra.mxu0 %v1078
    %1668 = vmatpush.msra.mxu0 %v1074
    %1669 = vmatpush.msra.mxu0 %v1070
    %1670 = vmatpush.msra.mxu0 %v1066
    %1671 = vmatpush.msra.mxu0 %v1062
    %1672 = vmatpush.msra.mxu0 %v1058
    %1673 = vmatpush.msra.mxu0 %v1054
    %1674 = vmatpush.msra.mxu0 %v1050
    %1675 = vmatpush.msra.mxu0 %v1046
    %1676 = vmatpush.msra.mxu0 %v1042
    %1677 = vmatmul.f32.gmra.mxu0 %v1558
    %v1678 = vpop.f32.mrf.mxu0
    %v1679 = vadd.f32 %v1659, %v1678
    %1680 = vdwg.mxu0
    %1681 = vmatpush.msra.mxu0 %v1166
    %1682 = vmatpush.msra.mxu0 %v1162
    %1683 = vmatpush.msra.mxu0 %v1158
    %1684 = vmatpush.msra.mxu0 %v1154
    %1685 = vmatpush.msra.mxu0 %v1150
    %1686 = vmatpush.msra.mxu0 %v1146
    %1687 = vmatpush.msra.mxu0 %v1142
    %1688 = vmatpush.msra.mxu0 %v1138
    %1689 = vmatpush.msra.mxu0 %v1134
    %1690 = vmatpush.msra.mxu0 %v1130
    %1691 = vmatpush.msra.mxu0 %v1126
    %1692 = vmatpush.msra.mxu0 %v1122
    %1693 = vmatpush.msra.mxu0 %v1118
    %1694 = vmatpush.msra.mxu0 %v1114
    %1695 = vmatpush.msra.mxu0 %v1110
    %1696 = vmatpush.msra.mxu0 %v1106
    %1697 = vmatmul.f32.gmra.mxu0 %v1559
    %v1698 = vpop.f32.mrf.mxu0
    %v1699 = vadd.f32 %v1679, %v1698
    %1700 = vdwg.mxu0
    %1701 = vmatpush.msra.mxu0 %v1230
    %1702 = vmatpush.msra.mxu0 %v1226
    %1703 = vmatpush.msra.mxu0 %v1222
    %1704 = vmatpush.msra.mxu0 %v1218
    %1705 = vmatpush.msra.mxu0 %v1214
    %1706 = vmatpush.msra.mxu0 %v1210
    %1707 = vmatpush.msra.mxu0 %v1206
    %1708 = vmatpush.msra.mxu0 %v1202
    %1709 = vmatpush.msra.mxu0 %v1198
    %1710 = vmatpush.msra.mxu0 %v1194
    %1711 = vmatpush.msra.mxu0 %v1190
    %1712 = vmatpush.msra.mxu0 %v1186
    %1713 = vmatpush.msra.mxu0 %v1182
    %1714 = vmatpush.msra.mxu0 %v1178
    %1715 = vmatpush.msra.mxu0 %v1174
    %1716 = vmatpush.msra.mxu0 %v1170
    %1717 = vmatmul.f32.gmra.mxu0 %v1560
    %v1718 = vpop.f32.mrf.mxu0
    %v1719 = vadd.f32 %v1699, %v1718
    %1720 = vdwg.mxu0
    %1721 = vmatpush.msra.mxu0 %v1039
    %1722 = vmatpush.msra.mxu0 %v1035
    %1723 = vmatpush.msra.mxu0 %v1031
    %1724 = vmatpush.msra.mxu0 %v1027
    %1725 = vmatpush.msra.mxu0 %v1023
    %1726 = vmatpush.msra.mxu0 %v1019
    %1727 = vmatpush.msra.mxu0 %v1015
    %1728 = vmatpush.msra.mxu0 %v1011
    %1729 = vmatpush.msra.mxu0 %v1007
    %1730 = vmatpush.msra.mxu0 %v1003
    %1731 = vmatpush.msra.mxu0 %v999
    %1732 = vmatpush.msra.mxu0 %v995
    %1733 = vmatpush.msra.mxu0 %v991
    %1734 = vmatpush.msra.mxu0 %v987
    %1735 = vmatpush.msra.mxu0 %v983
    %1736 = vmatpush.msra.mxu0 %v979
    %1737 = vmatmul.f32.gmra.mxu0 %v1557
    %v1738 = vpop.f32.mrf.mxu0
    %v1739 = vadd.f32 1e-05, %v1738
    %1740 = vdwg.mxu0
    %1741 = vmatpush.msra.mxu0 %v1103
    %1742 = vmatpush.msra.mxu0 %v1099
    %1743 = vmatpush.msra.mxu0 %v1095
    %1744 = vmatpush.msra.mxu0 %v1091
    %1745 = vmatpush.msra.mxu0 %v1087
    %1746 = vmatpush.msra.mxu0 %v1083
    %1747 = vmatpush.msra.mxu0 %v1079
    %1748 = vmatpush.msra.mxu0 %v1075
    %1749 = vmatpush.msra.mxu0 %v1071
    %1750 = vmatpush.msra.mxu0 %v1067
    %1751 = vmatpush.msra.mxu0 %v1063
    %1752 = vmatpush.msra.mxu0 %v1059
    %1753 = vmatpush.msra.mxu0 %v1055
    %1754 = vmatpush.msra.mxu0 %v1051
    %1755 = vmatpush.msra.mxu0 %v1047
    %1756 = vmatpush.msra.mxu0 %v1043
    %1757 = vmatmul.f32.gmra.mxu0 %v1558
    %v1758 = vpop.f32.mrf.mxu0
    %v1759 = vadd.f32 %v1739, %v1758
    %1760 = vdwg.mxu0
    %1761 = vmatpush.msra.mxu0 %v1167
    %1762 = vmatpush.msra.mxu0 %v1163
    %1763 = vmatpush.msra.mxu0 %v1159
    %1764 = vmatpush.msra.mxu0 %v1155
    %1765 = vmatpush.msra.mxu0 %v1151
    %1766 = vmatpush.msra.mxu0 %v1147
    %1767 = vmatpush.msra.mxu0 %v1143
    %1768 = vmatpush.msra.mxu0 %v1139
    %1769 = vmatpush.msra.mxu0 %v1135
    %1770 = vmatpush.msra.mxu0 %v1131
    %1771 = vmatpush.msra.mxu0 %v1127
    %1772 = vmatpush.msra.mxu0 %v1123
    %1773 = vmatpush.msra.mxu0 %v1119
    %1774 = vmatpush.msra.mxu0 %v1115
    %1775 = vmatpush.msra.mxu0 %v1111
    %1776 = vmatpush.msra.mxu0 %v1107
    %1777 = vmatmul.f32.gmra.mxu0 %v1559
    %v1778 = vpop.f32.mrf.mxu0
    %v1779 = vadd.f32 %v1759, %v1778
    %1780 = vdwg.mxu0
    %1781 = vmatpush.msra.mxu0 %v1231
    %1782 = vmatpush.msra.mxu0 %v1227
    %1783 = vmatpush.msra.mxu0 %v1223
    %1784 = vmatpush.msra.mxu0 %v1219
    %1785 = vmatpush.msra.mxu0 %v1215
    %1786 = vmatpush.msra.mxu0 %v1211
    %1787 = vmatpush.msra.mxu0 %v1207
    %1788 = vmatpush.msra.mxu0 %v1203
    %1789 = vmatpush.msra.mxu0 %v1199
    %1790 = vmatpush.msra.mxu0 %v1195
    %1791 = vmatpush.msra.mxu0 %v1191
    %1792 = vmatpush.msra.mxu0 %v1187
    %1793 = vmatpush.msra.mxu0 %v1183
    %1794 = vmatpush.msra.mxu0 %v1179
    %1795 = vmatpush.msra.mxu0 %v1175
    %1796 = vmatpush.msra.mxu0 %v1171
    %1797 = vmatmul.f32.gmra.mxu0 %v1560
    %v1798 = vpop.f32.mrf.mxu0
    %v1799 = vadd.f32 %v1779, %v1798
    %1800 = vdwg.mxu0
    %1801 = vmatpush.msra.mxu0 %v1040
    %1802 = vmatpush.msra.mxu0 %v1036
    %1803 = vmatpush.msra.mxu0 %v1032
    %1804 = vmatpush.msra.mxu0 %v1028
    %1805 = vmatpush.msra.mxu0 %v1024
    %1806 = vmatpush.msra.mxu0 %v1020
    %1807 = vmatpush.msra.mxu0 %v1016
    %1808 = vmatpush.msra.mxu0 %v1012
    %1809 = vmatpush.msra.mxu0 %v1008
    %1810 = vmatpush.msra.mxu0 %v1004
    %1811 = vmatpush.msra.mxu0 %v1000
    %1812 = vmatpush.msra.mxu0 %v996
    %1813 = vmatpush.msra.mxu0 %v992
    %1814 = vmatpush.msra.mxu0 %v988
    %1815 = vmatpush.msra.mxu0 %v984
    %1816 = vmatpush.msra.mxu0 %v980
    %1817 = vmatmul.f32.gmra.mxu0 %v1557
    %v1818 = vpop.f32.mrf.mxu0
    %v1819 = vadd.f32 1e-05, %v1818
    %1820 = vdwg.mxu0
    %1821 = vmatpush.msra.mxu0 %v1104
    %1822 = vmatpush.msra.mxu0 %v1100
    %1823 = vmatpush.msra.mxu0 %v1096
    %1824 = vmatpush.msra.mxu0 %v1092
    %1825 = vmatpush.msra.mxu0 %v1088
    %1826 = vmatpush.msra.mxu0 %v1084
    %1827 = vmatpush.msra.mxu0 %v1080
    %1828 = vmatpush.msra.mxu0 %v1076
    %1829 = vmatpush.msra.mxu0 %v1072
    %1830 = vmatpush.msra.mxu0 %v1068
    %1831 = vmatpush.msra.mxu0 %v1064
    %1832 = vmatpush.msra.mxu0 %v1060
    %1833 = vmatpush.msra.mxu0 %v1056
    %1834 = vmatpush.msra.mxu0 %v1052
    %1835 = vmatpush.msra.mxu0 %v1048
    %1836 = vmatpush.msra.mxu0 %v1044
    %1837 = vmatmul.f32.gmra.mxu0 %v1558
    %v1838 = vpop.f32.mrf.mxu0
    %v1839 = vadd.f32 %v1819, %v1838
    %1840 = vdwg.mxu0
    %1841 = vmatpush.msra.mxu0 %v1168
    %1842 = vmatpush.msra.mxu0 %v1164
    %1843 = vmatpush.msra.mxu0 %v1160
    %1844 = vmatpush.msra.mxu0 %v1156
    %1845 = vmatpush.msra.mxu0 %v1152
    %1846 = vmatpush.msra.mxu0 %v1148
    %1847 = vmatpush.msra.mxu0 %v1144
    %1848 = vmatpush.msra.mxu0 %v1140
    %1849 = vmatpush.msra.mxu0 %v1136
    %1850 = vmatpush.msra.mxu0 %v1132
    %1851 = vmatpush.msra.mxu0 %v1128
    %1852 = vmatpush.msra.mxu0 %v1124
    %1853 = vmatpush.msra.mxu0 %v1120
    %1854 = vmatpush.msra.mxu0 %v1116
    %1855 = vmatpush.msra.mxu0 %v1112
    %1856 = vmatpush.msra.mxu0 %v1108
    %1857 = vmatmul.f32.gmra.mxu0 %v1559
    %v1858 = vpop.f32.mrf.mxu0
    %v1859 = vadd.f32 %v1839, %v1858
    %1860 = vdwg.mxu0
    %1861 = vmatpush.msra.mxu0 %v1232
    %1862 = vmatpush.msra.mxu0 %v1228
    %1863 = vmatpush.msra.mxu0 %v1224
    %1864 = vmatpush.msra.mxu0 %v1220
    %1865 = vmatpush.msra.mxu0 %v1216
    %1866 = vmatpush.msra.mxu0 %v1212
    %1867 = vmatpush.msra.mxu0 %v1208
    %1868 = vmatpush.msra.mxu0 %v1204
    %1869 = vmatpush.msra.mxu0 %v1200
    %1870 = vmatpush.msra.mxu0 %v1196
    %1871 = vmatpush.msra.mxu0 %v1192
    %1872 = vmatpush.msra.mxu0 %v1188
    %1873 = vmatpush.msra.mxu0 %v1184
    %1874 = vmatpush.msra.mxu0 %v1180
    %1875 = vmatpush.msra.mxu0 %v1176
    %1876 = vmatpush.msra.mxu0 %v1172
    %1877 = vmatmul.f32.gmra.mxu0 %v1560
    %v1878 = vpop.f32.mrf.mxu0
    %v1879 = vadd.f32 %v1859, %v1878
    %1880 = vdwg.mxu0
    %v1881 = vrsqrt.pop %v1639
    %v1882 = vmul.f32 %v1881, %v1639
    %v1883 = vmul.f32 %v1882, %v1881
    %v1884 = vmul.f32 0.5, %v1883
    %v1885 = vsub.f32 1.5, %v1884
    %v1886 = vmul.f32 %v1881, %v1885
    %vm1887 = vweird.f32 %v1639
    %vm1888 = vweird.f32 %v1881
    %vm1889 = vmor %vm1887, %vm1888
    %v1890 = vsel %vm1889, %v1881, %v1886
    %v1891 = vrsqrt.pop %v1719
    %v1892 = vmul.f32 %v1891, %v1719
    %v1893 = vmul.f32 %v1892, %v1891
    %v1894 = vmul.f32 0.5, %v1893
    %v1895 = vsub.f32 1.5, %v1894
    %v1896 = vmul.f32 %v1891, %v1895
    %vm1897 = vweird.f32 %v1719
    %vm1898 = vweird.f32 %v1891
    %vm1899 = vmor %vm1897, %vm1898
    %v1900 = vsel %vm1899, %v1891, %v1896
    %v1901 = vrsqrt.pop %v1799
    %v1902 = vmul.f32 %v1901, %v1799
    %v1903 = vmul.f32 %v1902, %v1901
    %v1904 = vmul.f32 0.5, %v1903
    %v1905 = vsub.f32 1.5, %v1904
    %v1906 = vmul.f32 %v1901, %v1905
    %vm1907 = vweird.f32 %v1799
    %vm1908 = vweird.f32 %v1901
    %vm1909 = vmor %vm1907, %vm1908
    %v1910 = vsel %vm1909, %v1901, %v1906
    %v1911 = vrsqrt.pop %v1879
    %v1912 = vmul.f32 %v1911, %v1879
    %v1913 = vmul.f32 %v1912, %v1911
    %v1914 = vmul.f32 0.5, %v1913
    %v1915 = vsub.f32 1.5, %v1914
    %v1916 = vmul.f32 %v1911, %v1915
    %vm1917 = vweird.f32 %v1879
    %vm1918 = vweird.f32 %v1911
    %vm1919 = vmor %vm1917, %vm1918
    %v1920 = vsel %vm1919, %v1911, %v1916
    %v1921 = vmul.f32 %v1553, %v1890
    %v1922 = vmul.f32 %v1554, %v1900
    %v1923 = vmul.f32 %v1555, %v1910
    %v1924 = vmul.f32 %v1556, %v1920
    %v1925 = vld [vmem:[%s5] sm:$0xf]
    %v1927 = vperm.slane %v1925, 0
    %v1928 = vperm.slane %v1925, 1
    %v1929 = vperm.slane %v1925, 2
    %v1930 = vperm.slane %v1925, 3
    %v1935 = vmul.f32 %v1921, %v1927
    %v1936 = vmul.f32 %v1922, %v1928
    %v1937 = vmul.f32 %v1923, %v1929
    %v1938 = vmul.f32 %v1924, %v1930
    %v1939 = vld [vmem:[#allocation11] sm:$0xf]
    %v1941 = vperm.slane %v1939, 0
    %v1942 = vperm.slane %v1939, 1
    %v1943 = vperm.slane %v1939, 2
    %v1944 = vperm.slane %v1939, 3
    %v1949 = vadd.f32 %v1935, %v1941
    %v1950 = vadd.f32 %v1936, %v1942
    %v1951 = vadd.f32 %v1937, %v1943
    %v1952 = vadd.f32 %v1938, %v1944
    %v1953 = vxor.u32 %v1949, 2147483648
    %v1954 = vxor.u32 %v1950, 2147483648
    %v1955 = vxor.u32 %v1951, 2147483648
    %v1956 = vxor.u32 %v1952, 2147483648
    %v1957 = vmul.f32 %v1953, 1.442695
    %v1958 = vpow.pop %v1957
    %v1959 = vmul.f32 %v1954, 1.442695
    %v1960 = vpow.pop %v1959
    %v1961 = vmul.f32 %v1955, 1.442695
    %v1962 = vpow.pop %v1961
    %v1963 = vmul.f32 %v1956, 1.442695
    %v1964 = vpow.pop %v1963
    %v1965 = vadd.f32 %v1958, 1.0
    %v1966 = vadd.f32 %v1960, 1.0
    %v1967 = vadd.f32 %v1962, 1.0
    %v1968 = vadd.f32 %v1964, 1.0
    %v1969 = vrcp.pop %v1965
    %v1970 = vmul.f32 %v1965, %v1969
    %v1971 = vsub.f32 1.0, %v1970
    %v1972 = vmul.f32 %v1969, %v1971
    %v1973 = vadd.f32 %v1969, %v1972
    %vm1974 = vweird.f32 %v1965
    %vm1975 = vweird.f32 %v1969
    %vm1976 = vmor %vm1974, %vm1975
    %v1977 = vsel %vm1976, %v1969, %v1973
    %v1978 = vand.u32 2147483647, %v1965
    %vm1979 = vcmp.eq.f32.partialorder %v1978, 8.507059e+37
    %v1980 = vand.u32 %v1965, 2147483648
    %v1981 = vor.u32 1.1754944e-38, %v1980
    %v1982 = vsel %vm1979, %v1981, %v1977
    %v1983 = vmul.f32 1.0, %v1982
    %v1984 = vrcp.pop %v1966
    %v1985 = vmul.f32 %v1966, %v1984
    %v1986 = vsub.f32 1.0, %v1985
    %v1987 = vmul.f32 %v1984, %v1986
    %v1988 = vadd.f32 %v1984, %v1987
    %vm1989 = vweird.f32 %v1966
    %vm1990 = vweird.f32 %v1984
    %vm1991 = vmor %vm1989, %vm1990
    %v1992 = vsel %vm1991, %v1984, %v1988
    %v1993 = vand.u32 2147483647, %v1966
    %vm1994 = vcmp.eq.f32.partialorder %v1993, 8.507059e+37
    %v1995 = vand.u32 %v1966, 2147483648
    %v1996 = vor.u32 1.1754944e-38, %v1995
    %v1997 = vsel %vm1994, %v1996, %v1992
    %v1998 = vmul.f32 1.0, %v1997
    %v1999 = vrcp.pop %v1967
    %v2000 = vmul.f32 %v1967, %v1999
    %v2001 = vsub.f32 1.0, %v2000
    %v2002 = vmul.f32 %v1999, %v2001
    %v2003 = vadd.f32 %v1999, %v2002
    %vm2004 = vweird.f32 %v1967
    %vm2005 = vweird.f32 %v1999
    %vm2006 = vmor %vm2004, %vm2005
    %v2007 = vsel %vm2006, %v1999, %v2003
    %v2008 = vand.u32 2147483647, %v1967
    %vm2009 = vcmp.eq.f32.partialorder %v2008, 8.507059e+37
    %v2010 = vand.u32 %v1967, 2147483648
    %v2011 = vor.u32 1.1754944e-38, %v2010
    %v2012 = vsel %vm2009, %v2011, %v2007
    %v2013 = vmul.f32 1.0, %v2012
    %v2014 = vrcp.pop %v1968
    %v2015 = vmul.f32 %v1968, %v2014
    %v2016 = vsub.f32 1.0, %v2015
    %v2017 = vmul.f32 %v2014, %v2016
    %v2018 = vadd.f32 %v2014, %v2017
    %vm2019 = vweird.f32 %v1968
    %vm2020 = vweird.f32 %v2014
    %vm2021 = vmor %vm2019, %vm2020
    %v2022 = vsel %vm2021, %v2014, %v2018
    %v2023 = vand.u32 2147483647, %v1968
    %vm2024 = vcmp.eq.f32.partialorder %v2023, 8.507059e+37
    %v2025 = vand.u32 %v1968, 2147483648
    %v2026 = vor.u32 1.1754944e-38, %v2025
    %v2027 = vsel %vm2024, %v2026, %v2022
    %v2028 = vmul.f32 1.0, %v2027
    %v2029 = vmul.f32 %v1949, %v1983
    %v2030 = vmul.f32 %v1950, %v1998
    %v2031 = vmul.f32 %v1951, %v2013
    %v2032 = vmul.f32 %v1952, %v2028
    %v2033 = vld [vmem:[#allocation14] sm:$0xff]
    %v2034 = vld [vmem:[#allocation14 + $0x8] sm:$0xff]
    %v2035 = vld [vmem:[#allocation14 + $0x10] sm:$0xff]
    %v2036 = vld [vmem:[#allocation14 + $0x18] sm:$0xff]
    %v2037 = vld [vmem:[#allocation14 + $0x20] sm:$0xff]
    %v2038 = vld [vmem:[#allocation14 + $0x28] sm:$0xff]
    %v2039 = vld [vmem:[#allocation14 + $0x30] sm:$0xff]
    %v2040 = vld [vmem:[#allocation14 + $0x38] sm:$0xff]
    %v2041 = vld [vmem:[#allocation14 + $0x40] sm:$0xff]
    %v2042 = vld [vmem:[#allocation14 + $0x48] sm:$0xff]
    %v2043 = vld [vmem:[#allocation14 + $0x50] sm:$0xff]
    %v2044 = vld [vmem:[#allocation14 + $0x58] sm:$0xff]
    %v2045 = vld [vmem:[#allocation14 + $0x60] sm:$0xff]
    %v2046 = vld [vmem:[#allocation14 + $0x68] sm:$0xff]
    %v2047 = vld [vmem:[#allocation14 + $0x70] sm:$0xff]
    %v2048 = vld [vmem:[#allocation14 + $0x78] sm:$0xff]
    %v2049 = vld [vmem:[#allocation14 + $0x80] sm:$0xff]
    %v2050 = vld [vmem:[#allocation14 + $0x88] sm:$0xff]
    %v2051 = vld [vmem:[#allocation14 + $0x90] sm:$0xff]
    %v2052 = vld [vmem:[#allocation14 + $0x98] sm:$0xff]
    %v2053 = vld [vmem:[#allocation14 + $0xa0] sm:$0xff]
    %v2054 = vld [vmem:[#allocation14 + $0xa8] sm:$0xff]
    %v2055 = vld [vmem:[#allocation14 + $0xb0] sm:$0xff]
    %v2056 = vld [vmem:[#allocation14 + $0xb8] sm:$0xff]
    %v2057 = vld [vmem:[#allocation14 + $0xc0] sm:$0xff]
    %v2058 = vld [vmem:[#allocation14 + $0xc8] sm:$0xff]
    %v2059 = vld [vmem:[#allocation14 + $0xd0] sm:$0xff]
    %v2060 = vld [vmem:[#allocation14 + $0xd8] sm:$0xff]
    %v2061 = vld [vmem:[#allocation14 + $0xe0] sm:$0xff]
    %v2062 = vld [vmem:[#allocation14 + $0xe8] sm:$0xff]
    %v2063 = vld [vmem:[#allocation14 + $0xf0] sm:$0xff]
    %v2064 = vld [vmem:[#allocation14 + $0xf8] sm:$0xff]
    %v2065 = vld [vmem:[#allocation14 + $0x100] sm:$0xff]
    %v2066 = vld [vmem:[#allocation14 + $0x108] sm:$0xff]
    %v2067 = vld [vmem:[#allocation14 + $0x110] sm:$0xff]
    %v2068 = vld [vmem:[#allocation14 + $0x118] sm:$0xff]
    %v2069 = vld [vmem:[#allocation14 + $0x120] sm:$0xff]
    %v2070 = vld [vmem:[#allocation14 + $0x128] sm:$0xff]
    %v2071 = vld [vmem:[#allocation14 + $0x130] sm:$0xff]
    %v2072 = vld [vmem:[#allocation14 + $0x138] sm:$0xff]
    %v2073 = vld [vmem:[#allocation14 + $0x140] sm:$0xff]
    %v2074 = vld [vmem:[#allocation14 + $0x148] sm:$0xff]
    %v2075 = vld [vmem:[#allocation14 + $0x150] sm:$0xff]
    %v2076 = vld [vmem:[#allocation14 + $0x158] sm:$0xff]
    %v2077 = vld [vmem:[#allocation14 + $0x160] sm:$0xff]
    %v2078 = vld [vmem:[#allocation14 + $0x168] sm:$0xff]
    %v2079 = vld [vmem:[#allocation14 + $0x170] sm:$0xff]
    %v2080 = vld [vmem:[#allocation14 + $0x178] sm:$0xff]
    %v2081 = vld [vmem:[#allocation14 + $0x180] sm:$0xff]
    %v2082 = vld [vmem:[#allocation14 + $0x188] sm:$0xff]
    %v2083 = vld [vmem:[#allocation14 + $0x190] sm:$0xff]
    %v2084 = vld [vmem:[#allocation14 + $0x198] sm:$0xff]
    %v2085 = vld [vmem:[#allocation14 + $0x1a0] sm:$0xff]
    %v2086 = vld [vmem:[#allocation14 + $0x1a8] sm:$0xff]
    %v2087 = vld [vmem:[#allocation14 + $0x1b0] sm:$0xff]
    %v2088 = vld [vmem:[#allocation14 + $0x1b8] sm:$0xff]
    %v2089 = vld [vmem:[#allocation14 + $0x1c0] sm:$0xff]
    %v2090 = vld [vmem:[#allocation14 + $0x1c8] sm:$0xff]
    %v2091 = vld [vmem:[#allocation14 + $0x1d0] sm:$0xff]
    %v2092 = vld [vmem:[#allocation14 + $0x1d8] sm:$0xff]
    %v2093 = vld [vmem:[#allocation14 + $0x1e0] sm:$0xff]
    %v2094 = vld [vmem:[#allocation14 + $0x1e8] sm:$0xff]
    %v2095 = vld [vmem:[#allocation14 + $0x1f0] sm:$0xff]
    %v2096 = vld [vmem:[#allocation14 + $0x1f8] sm:$0xff]
    %v2097 = vld [vmem:[%s9] sm:$0x1]
    %2098 = vmatpush.msra.mxu0 %v2048
    %2099 = vmatpush.msra.mxu0 %v2047
    %2100 = vmatpush.msra.mxu0 %v2046
    %2101 = vmatpush.msra.mxu0 %v2045
    %2102 = vmatpush.msra.mxu0 %v2044
    %2103 = vmatpush.msra.mxu0 %v2043
    %2104 = vmatpush.msra.mxu0 %v2042
    %2105 = vmatpush.msra.mxu0 %v2041
    %2106 = vmatpush.msra.mxu0 %v2040
    %2107 = vmatpush.msra.mxu0 %v2039
    %2108 = vmatpush.msra.mxu0 %v2038
    %2109 = vmatpush.msra.mxu0 %v2037
    %2110 = vmatpush.msra.mxu0 %v2036
    %2111 = vmatpush.msra.mxu0 %v2035
    %2112 = vmatpush.msra.mxu0 %v2034
    %2113 = vmatpush.msra.mxu0 %v2033
    %2114 = vmatmul.f32.gmra.mxu0 %v2029
    %v2115 = vpop.f32.mrf.mxu0
    %v2116 = vadd.f32 %v2097, %v2115
    %2117 = vdwg.mxu0
    %2118 = vmatpush.msra.mxu0 %v2064
    %2119 = vmatpush.msra.mxu0 %v2063
    %2120 = vmatpush.msra.mxu0 %v2062
    %2121 = vmatpush.msra.mxu0 %v2061
    %2122 = vmatpush.msra.mxu0 %v2060
    %2123 = vmatpush.msra.mxu0 %v2059
    %2124 = vmatpush.msra.mxu0 %v2058
    %2125 = vmatpush.msra.mxu0 %v2057
    %2126 = vmatpush.msra.mxu0 %v2056
    %2127 = vmatpush.msra.mxu0 %v2055
    %2128 = vmatpush.msra.mxu0 %v2054
    %2129 = vmatpush.msra.mxu0 %v2053
    %2130 = vmatpush.msra.mxu0 %v2052
    %2131 = vmatpush.msra.mxu0 %v2051
    %2132 = vmatpush.msra.mxu0 %v2050
    %2133 = vmatpush.msra.mxu0 %v2049
    %2134 = vmatmul.f32.gmra.mxu0 %v2030
    %v2135 = vpop.f32.mrf.mxu0
    %v2136 = vadd.f32 %v2116, %v2135
    %2137 = vdwg.mxu0
    %2138 = vmatpush.msra.mxu0 %v2080
    %2139 = vmatpush.msra.mxu0 %v2079
    %2140 = vmatpush.msra.mxu0 %v2078
    %2141 = vmatpush.msra.mxu0 %v2077
    %2142 = vmatpush.msra.mxu0 %v2076
    %2143 = vmatpush.msra.mxu0 %v2075
    %2144 = vmatpush.msra.mxu0 %v2074
    %2145 = vmatpush.msra.mxu0 %v2073
    %2146 = vmatpush.msra.mxu0 %v2072
    %2147 = vmatpush.msra.mxu0 %v2071
    %2148 = vmatpush.msra.mxu0 %v2070
    %2149 = vmatpush.msra.mxu0 %v2069
    %2150 = vmatpush.msra.mxu0 %v2068
    %2151 = vmatpush.msra.mxu0 %v2067
    %2152 = vmatpush.msra.mxu0 %v2066
    %2153 = vmatpush.msra.mxu0 %v2065
    %2154 = vmatmul.f32.gmra.mxu0 %v2031
    %v2155 = vpop.f32.mrf.mxu0
    %v2156 = vadd.f32 %v2136, %v2155
    %2157 = vdwg.mxu0
    %2158 = vmatpush.msra.mxu0 %v2096
    %2159 = vmatpush.msra.mxu0 %v2095
    %2160 = vmatpush.msra.mxu0 %v2094
    %2161 = vmatpush.msra.mxu0 %v2093
    %2162 = vmatpush.msra.mxu0 %v2092
    %2163 = vmatpush.msra.mxu0 %v2091
    %2164 = vmatpush.msra.mxu0 %v2090
    %2165 = vmatpush.msra.mxu0 %v2089
    %2166 = vmatpush.msra.mxu0 %v2088
    %2167 = vmatpush.msra.mxu0 %v2087
    %2168 = vmatpush.msra.mxu0 %v2086
    %2169 = vmatpush.msra.mxu0 %v2085
    %2170 = vmatpush.msra.mxu0 %v2084
    %2171 = vmatpush.msra.mxu0 %v2083
    %2172 = vmatpush.msra.mxu0 %v2082
    %2173 = vmatpush.msra.mxu0 %v2081
    %2174 = vmatmul.f32.gmra.mxu0 %v2032
    %v2175 = vpop.f32.mrf.mxu0
    %v2176 = vadd.f32 %v2156, %v2175
    %2177 = vdwg.mxu0
    %v2178 = vld [vmem:[%s10] sm:$0x1]
    %v2179 = vadd.f32 %v2176, %v2178
    %2180 = vst [vmem:[#allocation16] sm:$0x1] %v2179
    // Predicated region
    $region78: #{tpu_custom_call.1} parent=1 // pred_check
      _
    $region79: #{tpu_custom_call.1} parent=1 // pred_check_branch
      %2182 = sbr.rel (0) target = $region81
    $region80: #{tpu_custom_call.1} parent=1 // pred_region
      %2184 = vsyncadd [#allocation4], 0
      %s2186 = sshll.u32 [#allocation16], 4
      %s2187 = int_to_ptr.vmem [resolvable:$true] %s2186
      %s2188 = sshll.u32 %s11, 4
      %s2189 = int_to_ptr.hbm [resolvable:$true] %s2188
      %2191 = dma.vmem_to_hbm [thread:$0]  %s2187, 16, %s2189, [#allocation4]
    $region81: #{tpu_custom_call.1} parent=1 // pred_fallthru
      _
    // Predicated region
    $region82: #{tpu_custom_call.1} parent=1 // pred_check
      _
    $region83: #{tpu_custom_call.1} parent=1 // pred_check_branch
      %2193 = sbr.rel (0) target = $region85
    $region84: #{tpu_custom_call.1} parent=1 // pred_region
      %2195 = dma.done [#allocation4], 16
    $region85: #{tpu_custom_call.1} parent=1 // pred_fallthru
      _
    %2196 = vsyncpa [#allocation3], 1
    %2197 = vsyncpa [#allocation6], 1
    %2198 = vsyncpa [#allocation9], 1
    %2199 = vsyncpa [#allocation12], 1
    %2200 = vsyncpa [#allocation15], 1
    %2201 = vsyncpa [#allocation4], 1

</llo_original>
